<compile_context>
chip_gen: v7x
topology: tpu7x:2x2x1
jax: 0.10.0
libtpu: 0.0.40
codegen_flags: <defaults>
</compile_context>

<pallas_src>
import functools

import numpy as np
import jax
import jax.numpy as jnp
from jax.experimental import pallas as pl
from jax.experimental.pallas import tpu as pltpu


# ---------------------------------------------------------------------------
# host-side constant operators
# ---------------------------------------------------------------------------
def _bilinear_matrix(out_size, in_size):
    """1-D bilinear resize operator matching F.interpolate(mode='bilinear',
    align_corners=False): rows = output index, cols = input index."""
    ratio = in_size / out_size
    B = np.zeros((out_size, in_size), np.float32)
    for r in range(out_size):
        src = max((r + 0.5) * ratio - 0.5, 0.0)     # torch clamps negatives to 0
        i0 = min(int(np.floor(src)), in_size - 1)
        i1 = min(i0 + 1, in_size - 1)
        lam = src - i0
        B[r, i0] += 1.0 - lam
        B[r, i1] += lam
    return B


@functools.lru_cache(maxsize=None)
def _shape_constants(n, c, cout, h, w, h2, w2, num_groups):
    """Shape-only operators, built once per shape and cached as device arrays."""
    cg = c // num_groups
    nh = n * h

    # per-image row-sum selector (batch folded on sublanes)
    sel_img = np.zeros((n, nh), np.float32)
    for i in range(n):
        sel_img[i, i * h:(i + 1) * h] = 1.0

    # group-average over the flattened (w, c) lane axis -> per-channel group mean
    gsel = np.zeros((c, c), np.float32)
    for g in range(num_groups):
        gsel[g * cg:(g + 1) * cg, g * cg:(g + 1) * cg] = 1.0 / (cg * h * w)
    gsum = np.tile(gsel, (w, 1))                                  # (w*c, c)

    # per-channel -> flattened-lane broadcast, and per-image -> H-rows broadcast
    tile_m = np.tile(np.eye(c, dtype=np.float32), (1, w))         # (c, w*c)
    e_img = np.zeros((nh, n), np.float32)
    for i in range(n):
        e_img[i * h:(i + 1) * h, i] = 1.0

    # bilinear x2 along W, NO conv pad columns (lane dim is exactly w2*c)
    bw = _bilinear_matrix(w2, w)
    a_w = np.kron(bw.T, np.eye(c, dtype=np.float32))              # (w*c, w2*c)

    # H-upsample + row-tap operator, pre-concatenated over di and block-diagonal
    # over the folded batch: out = u_cat @ vstack_di(P_di)
    bh = _bilinear_matrix(h2, h)
    u_cat = np.zeros((n * h2, 3 * nh), np.float32)
    for di in range(3):
        u_di = np.zeros((h2, h), np.float32)
        lo, hi = max(0, 1 - di), min(h2, h2 + 1 - di)
        u_di[lo:hi] = bh[lo + di - 1: hi + di - 1]
        for i in range(n):
            u_cat[i * h2:(i + 1) * h2,
                  di * nh + i * h: di * nh + (i + 1) * h] = u_di

    # conv W-taps in unpadded coordinates (dj shift + edge drop)
    e_taps = np.zeros((3, w2, w2), np.float32)
    for dj in range(3):
        for j in range(w2):
            i_src = j + dj - 1
            if 0 <= i_src < w2:
                e_taps[dj, i_src, j] = 1.0

    return (jnp.asarray(sel_img), jnp.asarray(gsum), jnp.asarray(tile_m),
            jnp.asarray(e_img), jnp.asarray(a_w, jnp.bfloat16),
            jnp.asarray(u_cat, jnp.bfloat16), jnp.asarray(e_taps))


def _build_gwide(conv_weight, e_taps, w2, cout):
    """Weight-standardized 3x3 taps + channel mixing, folded with the dj shift into
    one wide operator [G_0 | G_1 | G_2] of shape (w2*c, 3*w2*cout).  Pure jnp so it
    fuses under jit and stays differentiable w.r.t. conv_weight."""
    wt = conv_weight.astype(jnp.float32)                          # (cout, c, 3, 3)
    wt = wt - wt.mean(axis=(1, 2, 3), keepdims=True)
    std = jnp.std(wt.reshape(wt.shape[0], -1), axis=1, ddof=1).reshape(-1, 1, 1, 1) + 1e-5
    wt = wt / std
    c = wt.shape[1]
    # g[di][i*c + ci, j*cout + co] = sum_dj e_taps[dj, i, j] * wt[co, ci, di, dj]
    g = jnp.einsum('xij,ocdx->dicjo', e_taps, wt)                 # (3, w2, c, w2, cout)
    g = g.reshape(3, w2 * c, w2 * cout)
    return jnp.transpose(g, (1, 0, 2)).reshape(w2 * c, 3 * w2 * cout).astype(jnp.bfloat16)


# ---------------------------------------------------------------------------
# fused Pallas kernel: GroupNorm -> Mish -> bilinear x2 -> 3x3 WS-conv
# single grid step; batch folded onto sublanes; every tensor is a lane-dense 2D slab
# ---------------------------------------------------------------------------
def _fused_upconv_kernel(x_ref, sel_ref, gsum_ref, tile_ref, eimg_ref,
                         gamma_ref, beta_ref, aw_ref, gwide_ref, ucat_ref,
                         o_ref, *, eps, w2cout):
    f32 = jnp.float32
    x = x_ref[...]                                                        # (N*H, W*C) f32

    # ---- GroupNorm stats (f32): per-image selector dots + group-average dots ----
    colsum = jnp.dot(sel_ref[...], x, preferred_element_type=f32)         # (N, W*C)
    colsq = jnp.dot(sel_ref[...], x * x, preferred_element_type=f32)      # (N, W*C)
    gmean = jnp.dot(colsum, gsum_ref[...], preferred_element_type=f32)    # (N, C)
    gmsq = jnp.dot(colsq, gsum_ref[...], preferred_element_type=f32)      # (N, C)
    inv = jax.lax.rsqrt(gmsq - gmean * gmean + eps)                       # (N, C)

    # broadcast per-image / per-group values onto the (N*H, W*C) slab via tiny dots
    inv_f = jnp.dot(eimg_ref[...],
                    jnp.dot(inv, tile_ref[...], preferred_element_type=f32),
                    preferred_element_type=f32)                           # (N*H, W*C)
    mscl_f = jnp.dot(eimg_ref[...],
                     jnp.dot(gmean * inv, tile_ref[...], preferred_element_type=f32),
                     preferred_element_type=f32)                          # (N*H, W*C)
    y = (x * inv_f - mscl_f) * gamma_ref[...] + beta_ref[...]             # GN affine

    # ---- Mish (f32 elementwise): y * tanh(softplus(y)) = y * u / (u + 2), u=(1+e^y)^2-1
    t = jnp.exp(jnp.minimum(y, 20.0))
    u = t * (t + 2.0)
    act = y * u / (u + 2.0)

    # ---- upsample + 3x3 WS-conv, reassociated, bf16 operands / f32 accumulation ----
    actw = jnp.dot(act.astype(jnp.bfloat16), aw_ref[...],
                   preferred_element_type=f32)                            # (N*H, W2*C)
    pwide = jnp.dot(actw.astype(jnp.bfloat16), gwide_ref[...],
                    preferred_element_type=f32)                           # (N*H, 3*W2*Cout)
    pcat = jnp.concatenate(
        [pwide[:, di * w2cout:(di + 1) * w2cout] for di in range(3)],
        axis=0).astype(jnp.bfloat16)                                      # (3*N*H, W2*Cout)
    o_ref[...] = jnp.dot(ucat_ref[...], pcat,
                         preferred_element_type=f32).astype(o_ref.dtype)  # (N*H2, W2*Cout)


# ---------------------------------------------------------------------------
# wrapper
# ---------------------------------------------------------------------------
def up_conv_layer(x, gamma, beta, conv_weight, *, num_groups, scale_factor, eps=1e-5):
    N, C, H, W = x.shape
    Cout = conv_weight.shape[0]
    H2, W2 = int(round(H * scale_factor)), int(round(W * scale_factor))

    sel_img, gsum, tile_m, e_img, a_w, u_cat, e_taps = _shape_constants(
        N, C, Cout, H, W, H2, W2, num_groups)
    g_wide = _build_gwide(conv_weight, e_taps, W2, Cout)

    # layout plumbing: channels-last, batch folded onto sublanes, (w, c) on lanes
    x_cl = jnp.transpose(x.astype(jnp.float32), (0, 2, 3, 1)).reshape(N * H, W * C)
    gamma_f = jnp.tile(jnp.asarray(gamma, jnp.float32).reshape(1, C), (1, W))  # (1, W*C)
    beta_f = jnp.tile(jnp.asarray(beta, jnp.float32).reshape(1, C), (1, W))    # (1, W*C)

    kern = functools.partial(_fused_upconv_kernel, eps=eps, w2cout=W2 * Cout)
    out2d = pl.pallas_call(
        kern,
        out_shape=jax.ShapeDtypeStruct((N * H2, W2 * Cout), jnp.float32),
        grid=(1,),
        in_specs=[
            pl.BlockSpec((N * H, W * C), lambda i: (0, 0)),             # x
            pl.BlockSpec((N, N * H), lambda i: (0, 0)),                 # sel_img
            pl.BlockSpec((W * C, C), lambda i: (0, 0)),                 # gsum
            pl.BlockSpec((C, W * C), lambda i: (0, 0)),                 # tile_m
            pl.BlockSpec((N * H, N), lambda i: (0, 0)),                 # e_img
            pl.BlockSpec((1, W * C), lambda i: (0, 0)),                 # gamma_f
            pl.BlockSpec((1, W * C), lambda i: (0, 0)),                 # beta_f
            pl.BlockSpec((W * C, W2 * C), lambda i: (0, 0)),            # a_w (bf16)
            pl.BlockSpec((W2 * C, 3 * W2 * Cout), lambda i: (0, 0)),    # g_wide (bf16)
            pl.BlockSpec((N * H2, 3 * N * H), lambda i: (0, 0)),        # u_cat (bf16)
        ],
        out_specs=pl.BlockSpec((N * H2, W2 * Cout), lambda i: (0, 0)),
        compiler_params=pltpu.CompilerParams(dimension_semantics=("arbitrary",)),
    )(x_cl, sel_img, gsum, tile_m, e_img, gamma_f, beta_f, a_w, g_wide, u_cat)

    # (N*H2, W2*Cout) -> (N, Cout, H2, W2): output-sized layout plumbing only.
    return out2d.reshape(N, H2, W2, Cout).transpose(0, 3, 1, 2)


if __name__ == "__main__":
    # upConvLayer(in_channels=4, out_channels=8, scale_factor=2, norm='GN',
    #             act='Mish', num_groups=2)  -- conv has bias=False in the module.
    N, C_in, H, W = 2, 4, 16, 16
    C_out, num_groups, scale_factor = 8, 2, 2

    key = jax.random.PRNGKey(0)
    kx, kw = jax.random.split(key)
    x = jax.random.normal(kx, (N, C_in, H, W), dtype=jnp.float32)
    conv_weight = 0.1 * jax.random.normal(kw, (C_out, C_in, 3, 3), dtype=jnp.float32)
    gamma = jnp.ones((C_in,), dtype=jnp.float32)   # GroupNorm affine init
    beta = jnp.zeros((C_in,), dtype=jnp.float32)

    out = up_conv_layer(x, gamma, beta, conv_weight,
                        num_groups=num_groups, scale_factor=scale_factor)
    out = jax.block_until_ready(out)
    assert out.shape == (N, C_out, H * scale_factor, W * scale_factor)
    assert bool(jnp.all(jnp.isfinite(out)))
    print("KERNEL_OK")
</pallas_src>

<mosaic_0001>
module attributes {stable_mosaic.version = 11 : i64} {
  func.func @_fused_upconv_kernel(%arg0: i32, %arg1: memref<32x64xf32, #tpu.memory_space<vmem>>, %arg2: memref<2x32xf32, #tpu.memory_space<vmem>>, %arg3: memref<64x4xf32, #tpu.memory_space<vmem>>, %arg4: memref<4x64xf32, #tpu.memory_space<vmem>>, %arg5: memref<32x2xf32, #tpu.memory_space<vmem>>, %arg6: memref<1x64xf32, #tpu.memory_space<vmem>>, %arg7: memref<1x64xf32, #tpu.memory_space<vmem>>, %arg8: memref<64x128xbf16, #tpu.memory_space<vmem>>, %arg9: memref<128x768xbf16, #tpu.memory_space<vmem>>, %arg10: memref<64x96xbf16, #tpu.memory_space<vmem>>, %arg11: memref<64x256xf32, #tpu.memory_space<vmem>>) attributes {dimension_semantics = [#tpu.dimension_semantics<arbitrary>], iteration_bounds = array<i64: 1>, scalar_prefetch = 0 : i64, scratch_operands = 0 : i64, tpu.core_type = #tpu.core_type<tc>, window_params = [{pipeline_mode = #tpu.pipeline_mode<synchronous>, transform_indices = @transform_0, window_bounds = array<i64: 32, 64>}, {pipeline_mode = #tpu.pipeline_mode<synchronous>, transform_indices = @transform_1, window_bounds = array<i64: 2, 32>}, {pipeline_mode = #tpu.pipeline_mode<synchronous>, transform_indices = @transform_2, window_bounds = array<i64: 64, 4>}, {pipeline_mode = #tpu.pipeline_mode<synchronous>, transform_indices = @transform_3, window_bounds = array<i64: 4, 64>}, {pipeline_mode = #tpu.pipeline_mode<synchronous>, transform_indices = @transform_4, window_bounds = array<i64: 32, 2>}, {pipeline_mode = #tpu.pipeline_mode<synchronous>, transform_indices = @transform_5, window_bounds = array<i64: 1, 64>}, {pipeline_mode = #tpu.pipeline_mode<synchronous>, transform_indices = @transform_6, window_bounds = array<i64: 1, 64>}, {pipeline_mode = #tpu.pipeline_mode<synchronous>, transform_indices = @transform_7, window_bounds = array<i64: 64, 128>}, {pipeline_mode = #tpu.pipeline_mode<synchronous>, transform_indices = @transform_8, window_bounds = array<i64: 128, 768>}, {pipeline_mode = #tpu.pipeline_mode<synchronous>, transform_indices = @transform_9, window_bounds = array<i64: 64, 96>}, {pipeline_mode = #tpu.pipeline_mode<synchronous>, transform_indices = @transform_10, window_bounds = array<i64: 64, 256>}]} {
    %c0 = arith.constant 0 : index
    %c0_0 = arith.constant 0 : index
    %0 = vector.load %arg1[%c0, %c0_0] : memref<32x64xf32, #tpu.memory_space<vmem>>, vector<32x64xf32>
    %c0_1 = arith.constant 0 : index
    %c0_2 = arith.constant 0 : index
    %1 = vector.load %arg2[%c0_1, %c0_2] : memref<2x32xf32, #tpu.memory_space<vmem>>, vector<2x32xf32>
    %cst = arith.constant dense<0.000000e+00> : vector<2x64xf32>
    %2 = tpu.matmul %1, %0, %cst {dimension_numbers = #tpu.dot_dimension_numbers<[1], [0], [0], [1], [0, 0, 1, 1], [], []>} : vector<2x32xf32>, vector<32x64xf32>, vector<2x64xf32> -> vector<2x64xf32>
    %c0_3 = arith.constant 0 : index
    %c0_4 = arith.constant 0 : index
    %3 = vector.load %arg2[%c0_3, %c0_4] : memref<2x32xf32, #tpu.memory_space<vmem>>, vector<2x32xf32>
    %4 = arith.mulf %0, %0 : vector<32x64xf32>
    %cst_5 = arith.constant dense<0.000000e+00> : vector<2x64xf32>
    %5 = tpu.matmul %3, %4, %cst_5 {dimension_numbers = #tpu.dot_dimension_numbers<[1], [0], [0], [1], [0, 0, 1, 1], [], []>} : vector<2x32xf32>, vector<32x64xf32>, vector<2x64xf32> -> vector<2x64xf32>
    %c0_6 = arith.constant 0 : index
    %c0_7 = arith.constant 0 : index
    %6 = vector.load %arg3[%c0_6, %c0_7] : memref<64x4xf32, #tpu.memory_space<vmem>>, vector<64x4xf32>
    %cst_8 = arith.constant dense<0.000000e+00> : vector<2x4xf32>
    %7 = tpu.matmul %2, %6, %cst_8 {dimension_numbers = #tpu.dot_dimension_numbers<[1], [0], [0], [1], [0, 0, 1, 1], [], []>} : vector<2x64xf32>, vector<64x4xf32>, vector<2x4xf32> -> vector<2x4xf32>
    %c0_9 = arith.constant 0 : index
    %c0_10 = arith.constant 0 : index
    %8 = vector.load %arg3[%c0_9, %c0_10] : memref<64x4xf32, #tpu.memory_space<vmem>>, vector<64x4xf32>
    %cst_11 = arith.constant dense<0.000000e+00> : vector<2x4xf32>
    %9 = tpu.matmul %5, %8, %cst_11 {dimension_numbers = #tpu.dot_dimension_numbers<[1], [0], [0], [1], [0, 0, 1, 1], [], []>} : vector<2x64xf32>, vector<64x4xf32>, vector<2x4xf32> -> vector<2x4xf32>
    %10 = arith.mulf %7, %7 : vector<2x4xf32>
    %11 = arith.subf %9, %10 : vector<2x4xf32>
    %cst_12 = arith.constant 9.99999974E-6 : f32
    %12 = vector.broadcast %cst_12 : f32 to vector<2x4xf32>
    %13 = arith.addf %11, %12 : vector<2x4xf32>
    %14 = math.rsqrt %13 : vector<2x4xf32>
    %c0_13 = arith.constant 0 : index
    %c0_14 = arith.constant 0 : index
    %15 = vector.load %arg5[%c0_13, %c0_14] : memref<32x2xf32, #tpu.memory_space<vmem>>, vector<32x2xf32>
    %c0_15 = arith.constant 0 : index
    %c0_16 = arith.constant 0 : index
    %16 = vector.load %arg4[%c0_15, %c0_16] : memref<4x64xf32, #tpu.memory_space<vmem>>, vector<4x64xf32>
    %cst_17 = arith.constant dense<0.000000e+00> : vector<2x64xf32>
    %17 = tpu.matmul %14, %16, %cst_17 {dimension_numbers = #tpu.dot_dimension_numbers<[1], [0], [0], [1], [0, 0, 1, 1], [], []>} : vector<2x4xf32>, vector<4x64xf32>, vector<2x64xf32> -> vector<2x64xf32>
    %cst_18 = arith.constant dense<0.000000e+00> : vector<32x64xf32>
    %18 = tpu.matmul %15, %17, %cst_18 {dimension_numbers = #tpu.dot_dimension_numbers<[1], [0], [0], [1], [0, 0, 1, 1], [], []>} : vector<32x2xf32>, vector<2x64xf32>, vector<32x64xf32> -> vector<32x64xf32>
    %c0_19 = arith.constant 0 : index
    %c0_20 = arith.constant 0 : index
    %19 = vector.load %arg5[%c0_19, %c0_20] : memref<32x2xf32, #tpu.memory_space<vmem>>, vector<32x2xf32>
    %20 = arith.mulf %7, %14 : vector<2x4xf32>
    %c0_21 = arith.constant 0 : index
    %c0_22 = arith.constant 0 : index
    %21 = vector.load %arg4[%c0_21, %c0_22] : memref<4x64xf32, #tpu.memory_space<vmem>>, vector<4x64xf32>
    %cst_23 = arith.constant dense<0.000000e+00> : vector<2x64xf32>
    %22 = tpu.matmul %20, %21, %cst_23 {dimension_numbers = #tpu.dot_dimension_numbers<[1], [0], [0], [1], [0, 0, 1, 1], [], []>} : vector<2x4xf32>, vector<4x64xf32>, vector<2x64xf32> -> vector<2x64xf32>
    %cst_24 = arith.constant dense<0.000000e+00> : vector<32x64xf32>
    %23 = tpu.matmul %19, %22, %cst_24 {dimension_numbers = #tpu.dot_dimension_numbers<[1], [0], [0], [1], [0, 0, 1, 1], [], []>} : vector<32x2xf32>, vector<2x64xf32>, vector<32x64xf32> -> vector<32x64xf32>
    %24 = arith.mulf %0, %18 : vector<32x64xf32>
    %25 = arith.subf %24, %23 : vector<32x64xf32>
    %c0_25 = arith.constant 0 : index
    %c0_26 = arith.constant 0 : index
    %26 = vector.load %arg6[%c0_25, %c0_26] : memref<1x64xf32, #tpu.memory_space<vmem>>, vector<1x64xf32>
    %27 = vector.broadcast %26 : vector<1x64xf32> to vector<32x64xf32>
    %28 = arith.mulf %25, %27 : vector<32x64xf32>
    %c0_27 = arith.constant 0 : index
    %c0_28 = arith.constant 0 : index
    %29 = vector.load %arg7[%c0_27, %c0_28] : memref<1x64xf32, #tpu.memory_space<vmem>>, vector<1x64xf32>
    %30 = vector.broadcast %29 : vector<1x64xf32> to vector<32x64xf32>
    %31 = arith.addf %28, %30 : vector<32x64xf32>
    %cst_29 = arith.constant 2.000000e+01 : f32
    %32 = vector.broadcast %cst_29 : f32 to vector<32x64xf32>
    %33 = arith.minimumf %31, %32 : vector<32x64xf32>
    %34 = math.exp %33 : vector<32x64xf32>
    %cst_30 = arith.constant 2.000000e+00 : f32
    %35 = vector.broadcast %cst_30 : f32 to vector<32x64xf32>
    %36 = arith.addf %34, %35 : vector<32x64xf32>
    %37 = arith.mulf %34, %36 : vector<32x64xf32>
    %38 = arith.mulf %31, %37 : vector<32x64xf32>
    %cst_31 = arith.constant 2.000000e+00 : f32
    %39 = vector.broadcast %cst_31 : f32 to vector<32x64xf32>
    %40 = arith.addf %37, %39 : vector<32x64xf32>
    %41 = arith.divf %38, %40 : vector<32x64xf32>
    %42 = arith.truncf %41 : vector<32x64xf32> to vector<32x64xbf16>
    %c0_32 = arith.constant 0 : index
    %c0_33 = arith.constant 0 : index
    %43 = vector.load %arg8[%c0_32, %c0_33] : memref<64x128xbf16, #tpu.memory_space<vmem>>, vector<64x128xbf16>
    %cst_34 = arith.constant dense<0.000000e+00> : vector<32x128xf32>
    %44 = tpu.matmul %42, %43, %cst_34 {dimension_numbers = #tpu.dot_dimension_numbers<[1], [0], [0], [1], [0, 0, 1, 1], [], []>} : vector<32x64xbf16>, vector<64x128xbf16>, vector<32x128xf32> -> vector<32x128xf32>
    %45 = arith.truncf %44 : vector<32x128xf32> to vector<32x128xbf16>
    %c0_35 = arith.constant 0 : index
    %c0_36 = arith.constant 0 : index
    %46 = vector.load %arg9[%c0_35, %c0_36] : memref<128x768xbf16, #tpu.memory_space<vmem>>, vector<128x768xbf16>
    %cst_37 = arith.constant dense<0.000000e+00> : vector<32x768xf32>
    %47 = tpu.matmul %45, %46, %cst_37 {dimension_numbers = #tpu.dot_dimension_numbers<[1], [0], [0], [1], [0, 0, 1, 1], [], []>} : vector<32x128xbf16>, vector<128x768xbf16>, vector<32x768xf32> -> vector<32x768xf32>
    %48 = vector.extract_strided_slice %47 {offsets = [0, 0], sizes = [32, 256], strides = [1, 1]} : vector<32x768xf32> to vector<32x256xf32>
    %49 = vector.extract_strided_slice %47 {offsets = [0, 256], sizes = [32, 256], strides = [1, 1]} : vector<32x768xf32> to vector<32x256xf32>
    %50 = vector.extract_strided_slice %47 {offsets = [0, 512], sizes = [32, 256], strides = [1, 1]} : vector<32x768xf32> to vector<32x256xf32>
    %51 = tpu.concatenate %48, %49, %50 in 0 : vector<32x256xf32>, vector<32x256xf32>, vector<32x256xf32> -> vector<96x256xf32>
    %52 = arith.truncf %51 : vector<96x256xf32> to vector<96x256xbf16>
    %c0_38 = arith.constant 0 : index
    %c0_39 = arith.constant 0 : index
    %53 = vector.load %arg10[%c0_38, %c0_39] : memref<64x96xbf16, #tpu.memory_space<vmem>>, vector<64x96xbf16>
    %cst_40 = arith.constant dense<0.000000e+00> : vector<64x256xf32>
    %54 = tpu.matmul %53, %52, %cst_40 {dimension_numbers = #tpu.dot_dimension_numbers<[1], [0], [0], [1], [0, 0, 1, 1], [], []>} : vector<64x96xbf16>, vector<96x256xbf16>, vector<64x256xf32> -> vector<64x256xf32>
    %c0_41 = arith.constant 0 : index
    %c0_42 = arith.constant 0 : index
    %55 = vector.load %arg11[%c0_41, %c0_42] : memref<64x256xf32, #tpu.memory_space<vmem>>, vector<64x256xf32>
    tpu.vector_store %arg11[%c0_41, %c0_42], %54 {strides = array<i32>} : memref<64x256xf32, #tpu.memory_space<vmem>>, vector<64x256xf32>,
    return
  }
  func.func @transform_0(%arg0: i32) -> (i32, i32) {
    %c0_i32 = arith.constant 0 : i32
    %c0_i32_0 = arith.constant 0 : i32
    %c0_i32_1 = arith.constant 0 : i32
    return %c0_i32, %c0_i32_0 : i32, i32
  }
  func.func @transform_1(%arg0: i32) -> (i32, i32) {
    %c0_i32 = arith.constant 0 : i32
    %c0_i32_0 = arith.constant 0 : i32
    %c0_i32_1 = arith.constant 0 : i32
    return %c0_i32, %c0_i32_0 : i32, i32
  }
  func.func @transform_2(%arg0: i32) -> (i32, i32) {
    %c0_i32 = arith.constant 0 : i32
    %c0_i32_0 = arith.constant 0 : i32
    %c0_i32_1 = arith.constant 0 : i32
    return %c0_i32, %c0_i32_0 : i32, i32
  }
  func.func @transform_3(%arg0: i32) -> (i32, i32) {
    %c0_i32 = arith.constant 0 : i32
    %c0_i32_0 = arith.constant 0 : i32
    %c0_i32_1 = arith.constant 0 : i32
    return %c0_i32, %c0_i32_0 : i32, i32
  }
  func.func @transform_4(%arg0: i32) -> (i32, i32) {
    %c0_i32 = arith.constant 0 : i32
    %c0_i32_0 = arith.constant 0 : i32
    %c0_i32_1 = arith.constant 0 : i32
    return %c0_i32, %c0_i32_0 : i32, i32
  }
  func.func @transform_5(%arg0: i32) -> (i32, i32) {
    %c0_i32 = arith.constant 0 : i32
    %c0_i32_0 = arith.constant 0 : i32
    %c0_i32_1 = arith.constant 0 : i32
    return %c0_i32, %c0_i32_0 : i32, i32
  }
  func.func @transform_6(%arg0: i32) -> (i32, i32) {
    %c0_i32 = arith.constant 0 : i32
    %c0_i32_0 = arith.constant 0 : i32
    %c0_i32_1 = arith.constant 0 : i32
    return %c0_i32, %c0_i32_0 : i32, i32
  }
  func.func @transform_7(%arg0: i32) -> (i32, i32) {
    %c0_i32 = arith.constant 0 : i32
    %c0_i32_0 = arith.constant 0 : i32
    %c0_i32_1 = arith.constant 0 : i32
    return %c0_i32, %c0_i32_0 : i32, i32
  }
  func.func @transform_8(%arg0: i32) -> (i32, i32) {
    %c0_i32 = arith.constant 0 : i32
    %c0_i32_0 = arith.constant 0 : i32
    %c0_i32_1 = arith.constant 0 : i32
    return %c0_i32, %c0_i32_0 : i32, i32
  }
  func.func @transform_9(%arg0: i32) -> (i32, i32) {
    %c0_i32 = arith.constant 0 : i32
    %c0_i32_0 = arith.constant 0 : i32
    %c0_i32_1 = arith.constant 0 : i32
    return %c0_i32, %c0_i32_0 : i32, i32
  }
  func.func @transform_10(%arg0: i32) -> (i32, i32) {
    %c0_i32 = arith.constant 0 : i32
    %c0_i32_0 = arith.constant 0 : i32
    %c0_i32_1 = arith.constant 0 : i32
    return %c0_i32, %c0_i32_0 : i32, i32
  }
}

</mosaic_0001>

<llo_original>
// kernel: tpu_custom_call.1
$region0: #{tpu_custom_call.1}
  #allocation0 [shape = 'u32[]', space=smem, size = 0x4, offset = 0x4, fixed_abs, tag = 'smem constant byte address 0x4 - core index']
  #allocation1 [shape = 'u32[144,128]{1,0:T(1,128)}', space=vmem, size = 0x12000, scoped, tag = 'internal scratch']
  %s0 = inlined_call_operand.vmem [shape: f32[32,64], index: 0, kind: input, shape index: {}]
  %s1 = inlined_call_operand.hbm [shape: f32[2,32], index: 1, kind: input, shape index: {}]
  %s2 = inlined_call_operand.vmem [shape: f32[64,4], index: 2, kind: input, shape index: {}]
  %s3 = inlined_call_operand.vmem [shape: f32[4,64], index: 3, kind: input, shape index: {}]
  %s4 = inlined_call_operand.vmem [shape: f32[32,2], index: 4, kind: input, shape index: {}]
  %s5 = inlined_call_operand.vmem [shape: f32[1,64], index: 5, kind: input, shape index: {}]
  %s6 = inlined_call_operand.vmem [shape: f32[1,64], index: 6, kind: input, shape index: {}]
  %s7 = inlined_call_operand.vmem [shape: bf16[64,128], index: 7, kind: input, shape index: {}]
  %s8 = inlined_call_operand.hbm [shape: bf16[128,768], index: 8, kind: input, shape index: {}]
  %s9 = inlined_call_operand.vmem [shape: bf16[64,96], index: 9, kind: input, shape index: {}]
  %s10 = inlined_call_operand.hbm [shape: f32[64,256], index: 10, kind: output, shape index: {}]
  %s11 = sld [smem:[#allocation0]]
  $region58: #{tpu_custom_call.1} parent=0
    _
  %s13 = ssub.s32 1, %s11
  %s14 = scalar_select 0, %s13, %s11
  $region1: #{tpu_custom_call.1} parent=0
    #allocation2 [shape = 'u8[1024]{0}', space=vmem, size = 0x400, scoped, tag = 'input window, operand 1, single buffered']
    #allocation3 [shape = 's32[1]{0}', space=sflag, size = 0x4, scoped, tag = 'scoped memory for tpu_custom_call.1']
    #allocation4 [shape = 's32[1]{0}', space=sflag, size = 0x4, scoped, tag = 'scoped memory for tpu_custom_call.1']
    #allocation5 [shape = 'u8[196608]{0}', space=vmem, size = 0x30000, scoped, tag = 'input window, operand 8, single buffered']
    #allocation6 [shape = 's32[1]{0}', space=sflag, size = 0x4, scoped, tag = 'scoped memory for tpu_custom_call.1']
    #allocation7 [shape = 'u8[65536]{0}', space=vmem, size = 0x10000, scoped, tag = 'output window, operand 0, single buffered']
    %15 = vsyncpa [#allocation3], 0
    %16 = vsyncpa [#allocation6], 0
    %17 = vsyncpa [#allocation4], 0
    // Predicated region
    $region2: #{tpu_custom_call.1} parent=1 // pred_check
      _
    $region3: #{tpu_custom_call.1} parent=1 // pred_check_branch
      %19 = sbr.rel (0) target = $region5
    $region4: #{tpu_custom_call.1} parent=1 // pred_region
      _
    $region5: #{tpu_custom_call.1} parent=1 // pred_fallthru
      _
    // Predicated region
    $region6: #{tpu_custom_call.1} parent=1 // pred_check
      _
    $region7: #{tpu_custom_call.1} parent=1 // pred_check_branch
      %21 = sbr.rel (0) target = $region9
    $region8: #{tpu_custom_call.1} parent=1 // pred_region
      %s23 = ssub.s32 32, 32
      %24 = vsyncadd [#allocation3], %s23
      %s26 = sshll.u32 [#allocation2], 4
      %s27 = int_to_ptr.vmem [resolvable:$true] %s26
      %29 = dma.hbm_to_vmem [thread:$0]  %s1, 32, %s27, [#allocation3]
    $region9: #{tpu_custom_call.1} parent=1 // pred_fallthru
      _
    // Predicated region
    $region10: #{tpu_custom_call.1} parent=1 // pred_check
      _
    $region11: #{tpu_custom_call.1} parent=1 // pred_check_branch
      %31 = sbr.rel (0) target = $region13
    $region12: #{tpu_custom_call.1} parent=1 // pred_region
      _
    $region13: #{tpu_custom_call.1} parent=1 // pred_fallthru
      _
    // Predicated region
    $region14: #{tpu_custom_call.1} parent=1 // pred_check
      _
    $region15: #{tpu_custom_call.1} parent=1 // pred_check_branch
      %33 = sbr.rel (0) target = $region17
    $region16: #{tpu_custom_call.1} parent=1 // pred_region
      _
    $region17: #{tpu_custom_call.1} parent=1 // pred_fallthru
      _
    // Predicated region
    $region18: #{tpu_custom_call.1} parent=1 // pred_check
      _
    $region19: #{tpu_custom_call.1} parent=1 // pred_check_branch
      %35 = sbr.rel (0) target = $region21
    $region20: #{tpu_custom_call.1} parent=1 // pred_region
      _
    $region21: #{tpu_custom_call.1} parent=1 // pred_fallthru
      _
    // Predicated region
    $region22: #{tpu_custom_call.1} parent=1 // pred_check
      _
    $region23: #{tpu_custom_call.1} parent=1 // pred_check_branch
      %37 = sbr.rel (0) target = $region25
    $region24: #{tpu_custom_call.1} parent=1 // pred_region
      _
    $region25: #{tpu_custom_call.1} parent=1 // pred_fallthru
      _
    // Predicated region
    $region26: #{tpu_custom_call.1} parent=1 // pred_check
      _
    $region27: #{tpu_custom_call.1} parent=1 // pred_check_branch
      %39 = sbr.rel (0) target = $region29
    $region28: #{tpu_custom_call.1} parent=1 // pred_region
      _
    $region29: #{tpu_custom_call.1} parent=1 // pred_fallthru
      _
    // Predicated region
    $region30: #{tpu_custom_call.1} parent=1 // pred_check
      _
    $region31: #{tpu_custom_call.1} parent=1 // pred_check_branch
      %41 = sbr.rel (0) target = $region33
    $region32: #{tpu_custom_call.1} parent=1 // pred_region
      _
    $region33: #{tpu_custom_call.1} parent=1 // pred_fallthru
      _
    // Predicated region
    $region34: #{tpu_custom_call.1} parent=1 // pred_check
      _
    $region35: #{tpu_custom_call.1} parent=1 // pred_check_branch
      %43 = sbr.rel (0) target = $region37
    $region36: #{tpu_custom_call.1} parent=1 // pred_region
      %s45 = ssub.s32 6144, 6144
      %46 = vsyncadd [#allocation6], %s45
      %s47 = sshll.u32 [#allocation5], 4
      %s48 = int_to_ptr.vmem [resolvable:$true] %s47
      %53 = dma.hbm_to_vmem [thread:$0]  %s8, 6144, %s48, [#allocation6], 384, 384, 24
    $region37: #{tpu_custom_call.1} parent=1 // pred_fallthru
      _
    // Predicated region
    $region38: #{tpu_custom_call.1} parent=1 // pred_check
      _
    $region39: #{tpu_custom_call.1} parent=1 // pred_check_branch
      %55 = sbr.rel (0) target = $region41
    $region40: #{tpu_custom_call.1} parent=1 // pred_region
      _
    $region41: #{tpu_custom_call.1} parent=1 // pred_fallthru
      _
    // Predicated region
    $region42: #{tpu_custom_call.1} parent=1 // pred_check
      _
    $region43: #{tpu_custom_call.1} parent=1 // pred_check_branch
      %57 = sbr.rel (0) target = $region45
    $region44: #{tpu_custom_call.1} parent=1 // pred_region
      %58 = dma.done [#allocation3], 32
    $region45: #{tpu_custom_call.1} parent=1 // pred_fallthru
      _
    // Predicated region
    $region46: #{tpu_custom_call.1} parent=1 // pred_check
      _
    $region47: #{tpu_custom_call.1} parent=1 // pred_check_branch
      %60 = sbr.rel (0) target = $region49
    $region48: #{tpu_custom_call.1} parent=1 // pred_region
      %61 = dma.done [#allocation6], 6144
    $region49: #{tpu_custom_call.1} parent=1 // pred_fallthru
      _
    %v63 = vld [vmem:[%s0] sm:$0xff]
    %v64 = vld [vmem:[%s0 + $0x8] sm:$0xff]
    %v65 = vld [vmem:[%s0 + $0x10] sm:$0xff]
    %v66 = vld [vmem:[%s0 + $0x18] sm:$0xff]
    %v67 = vld [vmem:[#allocation2] sm:$0x3]
    %vm68 = vcmask 261120
    %v70 = vsel %vm68, %v67, 0
    %72 = vmatprep.subr.mxu0 0.0
    %73 = vmatpush1.msra.mxu0 %v63
    %74 = vmatprep.subr.mxu0 0.0
    %75 = vmatpush1.msra.mxu0 %v64
    %76 = vmatprep.subr.mxu0 0.0
    %77 = vmatpush1.msra.mxu0 %v65
    %78 = vmatprep.subr.mxu0 0.0
    %79 = vmatpush1.msra.mxu0 %v66
    %80 = vmatprep.subr.mxu0 0.0
    %81 = vmatpush1.msra.mxu0 0.0
    %82 = vmatprep.subr.mxu0 0.0
    %83 = vmatpush1.msra.mxu0 0.0
    %84 = vmatprep.subr.mxu0 0.0
    %85 = vmatpush1.msra.mxu0 0.0
    %86 = vmatprep.subr.mxu0 0.0
    %87 = vmatpush1.msra.mxu0 0.0
    %88 = vmatprep.subr.mxu0 0.0
    %89 = vmatpush1.msra.mxu0 0.0
    %90 = vmatprep.subr.mxu0 0.0
    %91 = vmatpush1.msra.mxu0 0.0
    %92 = vmatprep.subr.mxu0 0.0
    %93 = vmatpush1.msra.mxu0 0.0
    %94 = vmatprep.subr.mxu0 0.0
    %95 = vmatpush1.msra.mxu0 0.0
    %96 = vmatprep.subr.mxu0 0.0
    %97 = vmatpush1.msra.mxu0 0.0
    %98 = vmatprep.subr.mxu0 0.0
    %99 = vmatpush1.msra.mxu0 0.0
    %100 = vmatprep.subr.mxu0 0.0
    %101 = vmatpush1.msra.mxu0 0.0
    %102 = vmatprep.subr.mxu0 0.0
    %103 = vmatpush1.msra.mxu0 0.0
    %104 = vmatprep.subr.mxu0 0.0
    %105 = vmatpush1.msra.mxu0 0.0
    %106 = vmatprep.subr.mxu0 0.0
    %107 = vmatpush1.msra.mxu0 0.0
    %108 = vmatprep.subr.mxu0 0.0
    %109 = vmatpush1.msra.mxu0 0.0
    %110 = vmatprep.subr.mxu0 0.0
    %111 = vmatpush1.msra.mxu0 0.0
    %112 = vmatprep.subr.mxu0 0.0
    %113 = vmatpush1.msra.mxu0 0.0
    %114 = vmatprep.subr.mxu0 0.0
    %115 = vmatpush1.msra.mxu0 0.0
    %116 = vmatprep.subr.mxu0 0.0
    %117 = vmatpush1.msra.mxu0 0.0
    %118 = vmatprep.subr.mxu0 0.0
    %119 = vmatpush1.msra.mxu0 0.0
    %120 = vmatprep.subr.mxu0 0.0
    %121 = vmatpush1.msra.mxu0 0.0
    %122 = vmatprep.subr.mxu0 0.0
    %123 = vmatpush1.msra.mxu0 0.0
    %124 = vmatprep.subr.mxu0 0.0
    %125 = vmatpush1.msra.mxu0 0.0
    %126 = vmatprep.subr.mxu0 0.0
    %127 = vmatpush1.msra.mxu0 0.0
    %128 = vmatprep.subr.mxu0 0.0
    %129 = vmatpush1.msra.mxu0 0.0
    %130 = vmatprep.subr.mxu0 0.0
    %131 = vmatpush1.msra.mxu0 0.0
    %132 = vmatprep.subr.mxu0 0.0
    %133 = vmatpush1.msra.mxu0 0.0
    %134 = vmatprep.subr.mxu0 0.0
    %135 = vmatpush1.msra.mxu0 0.0
    %136 = vmatprep.mubr.f32.mxu0 0.0
    %137 = vmatmul.mubr.f32.gmra.mrb[0].mxu0 %v70
    %v138 = vpop.f32.mrb[0].mxu0
    %v139 = vadd.f32 0.0, %v138
    %v140 = vpop.f32.mrb[0].mxu0
    %141 = vdwg.mxu0
    %v142 = vmul.f32 %v63, %v63
    %v143 = vmul.f32 %v64, %v64
    %v144 = vmul.f32 %v65, %v65
    %v145 = vmul.f32 %v66, %v66
    %146 = vmatprep.subr.mxu0 0.0
    %147 = vmatpush1.msra.mxu0 %v142
    %148 = vmatprep.subr.mxu0 0.0
    %149 = vmatpush1.msra.mxu0 %v143
    %150 = vmatprep.subr.mxu0 0.0
    %151 = vmatpush1.msra.mxu0 %v144
    %152 = vmatprep.subr.mxu0 0.0
    %153 = vmatpush1.msra.mxu0 %v145
    %154 = vmatprep.subr.mxu0 0.0
    %155 = vmatpush1.msra.mxu0 0.0
    %156 = vmatprep.subr.mxu0 0.0
    %157 = vmatpush1.msra.mxu0 0.0
    %158 = vmatprep.subr.mxu0 0.0
    %159 = vmatpush1.msra.mxu0 0.0
    %160 = vmatprep.subr.mxu0 0.0
    %161 = vmatpush1.msra.mxu0 0.0
    %162 = vmatprep.subr.mxu0 0.0
    %163 = vmatpush1.msra.mxu0 0.0
    %164 = vmatprep.subr.mxu0 0.0
    %165 = vmatpush1.msra.mxu0 0.0
    %166 = vmatprep.subr.mxu0 0.0
    %167 = vmatpush1.msra.mxu0 0.0
    %168 = vmatprep.subr.mxu0 0.0
    %169 = vmatpush1.msra.mxu0 0.0
    %170 = vmatprep.subr.mxu0 0.0
    %171 = vmatpush1.msra.mxu0 0.0
    %172 = vmatprep.subr.mxu0 0.0
    %173 = vmatpush1.msra.mxu0 0.0
    %174 = vmatprep.subr.mxu0 0.0
    %175 = vmatpush1.msra.mxu0 0.0
    %176 = vmatprep.subr.mxu0 0.0
    %177 = vmatpush1.msra.mxu0 0.0
    %178 = vmatprep.subr.mxu0 0.0
    %179 = vmatpush1.msra.mxu0 0.0
    %180 = vmatprep.subr.mxu0 0.0
    %181 = vmatpush1.msra.mxu0 0.0
    %182 = vmatprep.subr.mxu0 0.0
    %183 = vmatpush1.msra.mxu0 0.0
    %184 = vmatprep.subr.mxu0 0.0
    %185 = vmatpush1.msra.mxu0 0.0
    %186 = vmatprep.subr.mxu0 0.0
    %187 = vmatpush1.msra.mxu0 0.0
    %188 = vmatprep.subr.mxu0 0.0
    %189 = vmatpush1.msra.mxu0 0.0
    %190 = vmatprep.subr.mxu0 0.0
    %191 = vmatpush1.msra.mxu0 0.0
    %192 = vmatprep.subr.mxu0 0.0
    %193 = vmatpush1.msra.mxu0 0.0
    %194 = vmatprep.subr.mxu0 0.0
    %195 = vmatpush1.msra.mxu0 0.0
    %196 = vmatprep.subr.mxu0 0.0
    %197 = vmatpush1.msra.mxu0 0.0
    %198 = vmatprep.subr.mxu0 0.0
    %199 = vmatpush1.msra.mxu0 0.0
    %200 = vmatprep.subr.mxu0 0.0
    %201 = vmatpush1.msra.mxu0 0.0
    %202 = vmatprep.subr.mxu0 0.0
    %203 = vmatpush1.msra.mxu0 0.0
    %204 = vmatprep.subr.mxu0 0.0
    %205 = vmatpush1.msra.mxu0 0.0
    %206 = vmatprep.subr.mxu0 0.0
    %207 = vmatpush1.msra.mxu0 0.0
    %208 = vmatprep.subr.mxu0 0.0
    %209 = vmatpush1.msra.mxu0 0.0
    %210 = vmatprep.mubr.f32.mxu0 0.0
    %211 = vmatmul.mubr.f32.gmra.mrb[0].mxu0 %v70
    %v212 = vpop.f32.mrb[0].mxu0
    %v213 = vadd.f32 0.0, %v212
    %v214 = vpop.f32.mrb[0].mxu0
    %215 = vdwg.mxu0
    %v216 = vld [vmem:[%s2] sm:$0xff]
    %v217 = vld [vmem:[%s2 + $0x8] sm:$0xff]
    %v218 = vld [vmem:[%s2 + $0x10] sm:$0xff]
    %v219 = vld [vmem:[%s2 + $0x18] sm:$0xff]
    %v220 = vld [vmem:[%s2 + $0x20] sm:$0xff]
    %v221 = vld [vmem:[%s2 + $0x28] sm:$0xff]
    %v222 = vld [vmem:[%s2 + $0x30] sm:$0xff]
    %v223 = vld [vmem:[%s2 + $0x38] sm:$0xff]
    %vm224 = vcmask 523264
    %v226 = vsel %vm224, %v139, 0
    %228 = vmatprep.subr.mxu0 0.0
    %229 = vmatpush1.msra.mxu0 %v216
    %230 = vmatprep.subr.mxu0 0.0
    %231 = vmatpush1.msra.mxu0 %v217
    %232 = vmatprep.subr.mxu0 0.0
    %233 = vmatpush1.msra.mxu0 %v218
    %234 = vmatprep.subr.mxu0 0.0
    %235 = vmatpush1.msra.mxu0 %v219
    %236 = vmatprep.subr.mxu0 0.0
    %237 = vmatpush1.msra.mxu0 %v220
    %238 = vmatprep.subr.mxu0 0.0
    %239 = vmatpush1.msra.mxu0 %v221
    %240 = vmatprep.subr.mxu0 0.0
    %241 = vmatpush1.msra.mxu0 %v222
    %242 = vmatprep.subr.mxu0 0.0
    %243 = vmatpush1.msra.mxu0 %v223
    %244 = vmatprep.subr.mxu0 0.0
    %245 = vmatpush1.msra.mxu0 0.0
    %246 = vmatprep.subr.mxu0 0.0
    %247 = vmatpush1.msra.mxu0 0.0
    %248 = vmatprep.subr.mxu0 0.0
    %249 = vmatpush1.msra.mxu0 0.0
    %250 = vmatprep.subr.mxu0 0.0
    %251 = vmatpush1.msra.mxu0 0.0
    %252 = vmatprep.subr.mxu0 0.0
    %253 = vmatpush1.msra.mxu0 0.0
    %254 = vmatprep.subr.mxu0 0.0
    %255 = vmatpush1.msra.mxu0 0.0
    %256 = vmatprep.subr.mxu0 0.0
    %257 = vmatpush1.msra.mxu0 0.0
    %258 = vmatprep.subr.mxu0 0.0
    %259 = vmatpush1.msra.mxu0 0.0
    %260 = vmatprep.subr.mxu0 0.0
    %261 = vmatpush1.msra.mxu0 0.0
    %262 = vmatprep.subr.mxu0 0.0
    %263 = vmatpush1.msra.mxu0 0.0
    %264 = vmatprep.subr.mxu0 0.0
    %265 = vmatpush1.msra.mxu0 0.0
    %266 = vmatprep.subr.mxu0 0.0
    %267 = vmatpush1.msra.mxu0 0.0
    %268 = vmatprep.subr.mxu0 0.0
    %269 = vmatpush1.msra.mxu0 0.0
    %270 = vmatprep.subr.mxu0 0.0
    %271 = vmatpush1.msra.mxu0 0.0
    %272 = vmatprep.subr.mxu0 0.0
    %273 = vmatpush1.msra.mxu0 0.0
    %274 = vmatprep.subr.mxu0 0.0
    %275 = vmatpush1.msra.mxu0 0.0
    %276 = vmatprep.subr.mxu0 0.0
    %277 = vmatpush1.msra.mxu0 0.0
    %278 = vmatprep.subr.mxu0 0.0
    %279 = vmatpush1.msra.mxu0 0.0
    %280 = vmatprep.subr.mxu0 0.0
    %281 = vmatpush1.msra.mxu0 0.0
    %282 = vmatprep.subr.mxu0 0.0
    %283 = vmatpush1.msra.mxu0 0.0
    %284 = vmatprep.subr.mxu0 0.0
    %285 = vmatpush1.msra.mxu0 0.0
    %286 = vmatprep.subr.mxu0 0.0
    %287 = vmatpush1.msra.mxu0 0.0
    %288 = vmatprep.subr.mxu0 0.0
    %289 = vmatpush1.msra.mxu0 0.0
    %290 = vmatprep.subr.mxu0 0.0
    %291 = vmatpush1.msra.mxu0 0.0
    %292 = vmatprep.mubr.f32.mxu0 0.0
    %293 = vmatmul.mubr.f32.gmra.mrb[0].mxu0 %v226
    %v294 = vpop.f32.mrb[0].mxu0
    %v295 = vadd.f32 0.0, %v294
    %v296 = vpop.f32.mrb[0].mxu0
    %297 = vdwg.mxu0
    %v299 = vsel %vm224, %v213, 0
    %301 = vmatprep.subr.mxu0 0.0
    %302 = vmatpush1.msra.mxu0 %v216
    %303 = vmatprep.subr.mxu0 0.0
    %304 = vmatpush1.msra.mxu0 %v217
    %305 = vmatprep.subr.mxu0 0.0
    %306 = vmatpush1.msra.mxu0 %v218
    %307 = vmatprep.subr.mxu0 0.0
    %308 = vmatpush1.msra.mxu0 %v219
    %309 = vmatprep.subr.mxu0 0.0
    %310 = vmatpush1.msra.mxu0 %v220
    %311 = vmatprep.subr.mxu0 0.0
    %312 = vmatpush1.msra.mxu0 %v221
    %313 = vmatprep.subr.mxu0 0.0
    %314 = vmatpush1.msra.mxu0 %v222
    %315 = vmatprep.subr.mxu0 0.0
    %316 = vmatpush1.msra.mxu0 %v223
    %317 = vmatprep.subr.mxu0 0.0
    %318 = vmatpush1.msra.mxu0 0.0
    %319 = vmatprep.subr.mxu0 0.0
    %320 = vmatpush1.msra.mxu0 0.0
    %321 = vmatprep.subr.mxu0 0.0
    %322 = vmatpush1.msra.mxu0 0.0
    %323 = vmatprep.subr.mxu0 0.0
    %324 = vmatpush1.msra.mxu0 0.0
    %325 = vmatprep.subr.mxu0 0.0
    %326 = vmatpush1.msra.mxu0 0.0
    %327 = vmatprep.subr.mxu0 0.0
    %328 = vmatpush1.msra.mxu0 0.0
    %329 = vmatprep.subr.mxu0 0.0
    %330 = vmatpush1.msra.mxu0 0.0
    %331 = vmatprep.subr.mxu0 0.0
    %332 = vmatpush1.msra.mxu0 0.0
    %333 = vmatprep.subr.mxu0 0.0
    %334 = vmatpush1.msra.mxu0 0.0
    %335 = vmatprep.subr.mxu0 0.0
    %336 = vmatpush1.msra.mxu0 0.0
    %337 = vmatprep.subr.mxu0 0.0
    %338 = vmatpush1.msra.mxu0 0.0
    %339 = vmatprep.subr.mxu0 0.0
    %340 = vmatpush1.msra.mxu0 0.0
    %341 = vmatprep.subr.mxu0 0.0
    %342 = vmatpush1.msra.mxu0 0.0
    %343 = vmatprep.subr.mxu0 0.0
    %344 = vmatpush1.msra.mxu0 0.0
    %345 = vmatprep.subr.mxu0 0.0
    %346 = vmatpush1.msra.mxu0 0.0
    %347 = vmatprep.subr.mxu0 0.0
    %348 = vmatpush1.msra.mxu0 0.0
    %349 = vmatprep.subr.mxu0 0.0
    %350 = vmatpush1.msra.mxu0 0.0
    %351 = vmatprep.subr.mxu0 0.0
    %352 = vmatpush1.msra.mxu0 0.0
    %353 = vmatprep.subr.mxu0 0.0
    %354 = vmatpush1.msra.mxu0 0.0
    %355 = vmatprep.subr.mxu0 0.0
    %356 = vmatpush1.msra.mxu0 0.0
    %357 = vmatprep.subr.mxu0 0.0
    %358 = vmatpush1.msra.mxu0 0.0
    %359 = vmatprep.subr.mxu0 0.0
    %360 = vmatpush1.msra.mxu0 0.0
    %361 = vmatprep.subr.mxu0 0.0
    %362 = vmatpush1.msra.mxu0 0.0
    %363 = vmatprep.subr.mxu0 0.0
    %364 = vmatpush1.msra.mxu0 0.0
    %365 = vmatprep.mubr.f32.mxu0 0.0
    %366 = vmatmul.mubr.f32.gmra.mrb[0].mxu0 %v299
    %v367 = vpop.f32.mrb[0].mxu0
    %v368 = vadd.f32 0.0, %v367
    %v369 = vpop.f32.mrb[0].mxu0
    %370 = vdwg.mxu0
    %v371 = vmul.f32 %v295, %v295
    %v372 = vsub.f32 %v368, %v371
    %v373 = vadd.f32 %v372, 1e-05
    %v374 = vrsqrt.pop %v373
    %v375 = vld [vmem:[%s4] sm:$0xff]
    %v376 = vld [vmem:[%s4 + $0x8] sm:$0xff]
    %v377 = vld [vmem:[%s4 + $0x10] sm:$0xff]
    %v378 = vld [vmem:[%s4 + $0x18] sm:$0xff]
    %v379 = vld [vmem:[%s3] sm:$0xf]
    %vm380 = vcmask 31744
    %v382 = vsel %vm380, %v374, 0
    %vm384 = vcmask 1043456
    %v386 = vsel %vm384, %v379, 0
    %388 = vmatprep.subr.mxu0 0.0
    %389 = vmatpush1.msra.mxu0 %v386
    %390 = vmatprep.subr.mxu0 0.0
    %391 = vmatpush1.msra.mxu0 0.0
    %392 = vmatprep.subr.mxu0 0.0
    %393 = vmatpush1.msra.mxu0 0.0
    %394 = vmatprep.subr.mxu0 0.0
    %395 = vmatpush1.msra.mxu0 0.0
    %396 = vmatprep.subr.mxu0 0.0
    %397 = vmatpush1.msra.mxu0 0.0
    %398 = vmatprep.subr.mxu0 0.0
    %399 = vmatpush1.msra.mxu0 0.0
    %400 = vmatprep.subr.mxu0 0.0
    %401 = vmatpush1.msra.mxu0 0.0
    %402 = vmatprep.subr.mxu0 0.0
    %403 = vmatpush1.msra.mxu0 0.0
    %404 = vmatprep.subr.mxu0 0.0
    %405 = vmatpush1.msra.mxu0 0.0
    %406 = vmatprep.subr.mxu0 0.0
    %407 = vmatpush1.msra.mxu0 0.0
    %408 = vmatprep.subr.mxu0 0.0
    %409 = vmatpush1.msra.mxu0 0.0
    %410 = vmatprep.subr.mxu0 0.0
    %411 = vmatpush1.msra.mxu0 0.0
    %412 = vmatprep.subr.mxu0 0.0
    %413 = vmatpush1.msra.mxu0 0.0
    %414 = vmatprep.subr.mxu0 0.0
    %415 = vmatpush1.msra.mxu0 0.0
    %416 = vmatprep.subr.mxu0 0.0
    %417 = vmatpush1.msra.mxu0 0.0
    %418 = vmatprep.subr.mxu0 0.0
    %419 = vmatpush1.msra.mxu0 0.0
    %420 = vmatprep.subr.mxu0 0.0
    %421 = vmatpush1.msra.mxu0 0.0
    %422 = vmatprep.subr.mxu0 0.0
    %423 = vmatpush1.msra.mxu0 0.0
    %424 = vmatprep.subr.mxu0 0.0
    %425 = vmatpush1.msra.mxu0 0.0
    %426 = vmatprep.subr.mxu0 0.0
    %427 = vmatpush1.msra.mxu0 0.0
    %428 = vmatprep.subr.mxu0 0.0
    %429 = vmatpush1.msra.mxu0 0.0
    %430 = vmatprep.subr.mxu0 0.0
    %431 = vmatpush1.msra.mxu0 0.0
    %432 = vmatprep.subr.mxu0 0.0
    %433 = vmatpush1.msra.mxu0 0.0
    %434 = vmatprep.subr.mxu0 0.0
    %435 = vmatpush1.msra.mxu0 0.0
    %436 = vmatprep.subr.mxu0 0.0
    %437 = vmatpush1.msra.mxu0 0.0
    %438 = vmatprep.subr.mxu0 0.0
    %439 = vmatpush1.msra.mxu0 0.0
    %440 = vmatprep.subr.mxu0 0.0
    %441 = vmatpush1.msra.mxu0 0.0
    %442 = vmatprep.subr.mxu0 0.0
    %443 = vmatpush1.msra.mxu0 0.0
    %444 = vmatprep.subr.mxu0 0.0
    %445 = vmatpush1.msra.mxu0 0.0
    %446 = vmatprep.subr.mxu0 0.0
    %447 = vmatpush1.msra.mxu0 0.0
    %448 = vmatprep.subr.mxu0 0.0
    %449 = vmatpush1.msra.mxu0 0.0
    %450 = vmatprep.subr.mxu0 0.0
    %451 = vmatpush1.msra.mxu0 0.0
    %452 = vmatprep.mubr.f32.mxu0 0.0
    %453 = vmatmul.mubr.f32.gmra.mrb[0].mxu0 %v382
    %v454 = vpop.f32.mrb[0].mxu0
    %v455 = vadd.f32 0.0, %v454
    %v456 = vpop.f32.mrb[0].mxu0
    %457 = vdwg.mxu0
    %vm458 = vcmask 15360
    %v460 = vsel %vm458, %v375, 0
    %v463 = vsel %vm458, %v376, 0
    %v466 = vsel %vm458, %v377, 0
    %v469 = vsel %vm458, %v378, 0
    %vm471 = vcmask 1041408
    %v473 = vsel %vm471, %v455, 0
    %475 = vmatprep.subr.mxu0 0.0
    %476 = vmatpush1.msra.mxu0 %v473
    %477 = vmatprep.subr.mxu0 0.0
    %478 = vmatpush1.msra.mxu0 0.0
    %479 = vmatprep.subr.mxu0 0.0
    %480 = vmatpush1.msra.mxu0 0.0
    %481 = vmatprep.subr.mxu0 0.0
    %482 = vmatpush1.msra.mxu0 0.0
    %483 = vmatprep.subr.mxu0 0.0
    %484 = vmatpush1.msra.mxu0 0.0
    %485 = vmatprep.subr.mxu0 0.0
    %486 = vmatpush1.msra.mxu0 0.0
    %487 = vmatprep.subr.mxu0 0.0
    %488 = vmatpush1.msra.mxu0 0.0
    %489 = vmatprep.subr.mxu0 0.0
    %490 = vmatpush1.msra.mxu0 0.0
    %491 = vmatprep.subr.mxu0 0.0
    %492 = vmatpush1.msra.mxu0 0.0
    %493 = vmatprep.subr.mxu0 0.0
    %494 = vmatpush1.msra.mxu0 0.0
    %495 = vmatprep.subr.mxu0 0.0
    %496 = vmatpush1.msra.mxu0 0.0
    %497 = vmatprep.subr.mxu0 0.0
    %498 = vmatpush1.msra.mxu0 0.0
    %499 = vmatprep.subr.mxu0 0.0
    %500 = vmatpush1.msra.mxu0 0.0
    %501 = vmatprep.subr.mxu0 0.0
    %502 = vmatpush1.msra.mxu0 0.0
    %503 = vmatprep.subr.mxu0 0.0
    %504 = vmatpush1.msra.mxu0 0.0
    %505 = vmatprep.subr.mxu0 0.0
    %506 = vmatpush1.msra.mxu0 0.0
    %507 = vmatprep.subr.mxu0 0.0
    %508 = vmatpush1.msra.mxu0 0.0
    %509 = vmatprep.subr.mxu0 0.0
    %510 = vmatpush1.msra.mxu0 0.0
    %511 = vmatprep.subr.mxu0 0.0
    %512 = vmatpush1.msra.mxu0 0.0
    %513 = vmatprep.subr.mxu0 0.0
    %514 = vmatpush1.msra.mxu0 0.0
    %515 = vmatprep.subr.mxu0 0.0
    %516 = vmatpush1.msra.mxu0 0.0
    %517 = vmatprep.subr.mxu0 0.0
    %518 = vmatpush1.msra.mxu0 0.0
    %519 = vmatprep.subr.mxu0 0.0
    %520 = vmatpush1.msra.mxu0 0.0
    %521 = vmatprep.subr.mxu0 0.0
    %522 = vmatpush1.msra.mxu0 0.0
    %523 = vmatprep.subr.mxu0 0.0
    %524 = vmatpush1.msra.mxu0 0.0
    %525 = vmatprep.subr.mxu0 0.0
    %526 = vmatpush1.msra.mxu0 0.0
    %527 = vmatprep.subr.mxu0 0.0
    %528 = vmatpush1.msra.mxu0 0.0
    %529 = vmatprep.subr.mxu0 0.0
    %530 = vmatpush1.msra.mxu0 0.0
    %531 = vmatprep.subr.mxu0 0.0
    %532 = vmatpush1.msra.mxu0 0.0
    %533 = vmatprep.subr.mxu0 0.0
    %534 = vmatpush1.msra.mxu0 0.0
    %535 = vmatprep.subr.mxu0 0.0
    %536 = vmatpush1.msra.mxu0 0.0
    %537 = vmatprep.subr.mxu0 0.0
    %538 = vmatpush1.msra.mxu0 0.0
    %539 = vmatprep.mubr.f32.mxu0 0.0
    %540 = vmatmul.mubr.f32.gmra.mrb[0].mxu0 %v460
    %v541 = vpop.f32.mrb[0].mxu0
    %v542 = vadd.f32 0.0, %v541
    %v543 = vpop.f32.mrb[0].mxu0
    %544 = vmatprep.mubr.f32.mxu0 0.0
    %545 = vmatmul.mubr.f32.gmra.mrb[0].mxu0 %v463
    %v546 = vpop.f32.mrb[0].mxu0
    %v547 = vadd.f32 0.0, %v546
    %v548 = vpop.f32.mrb[0].mxu0
    %549 = vmatprep.mubr.f32.mxu0 0.0
    %550 = vmatmul.mubr.f32.gmra.mrb[0].mxu0 %v466
    %v551 = vpop.f32.mrb[0].mxu0
    %v552 = vadd.f32 0.0, %v551
    %v553 = vpop.f32.mrb[0].mxu0
    %554 = vmatprep.mubr.f32.mxu0 0.0
    %555 = vmatmul.mubr.f32.gmra.mrb[0].mxu0 %v469
    %v556 = vpop.f32.mrb[0].mxu0
    %v557 = vadd.f32 0.0, %v556
    %v558 = vpop.f32.mrb[0].mxu0
    %559 = vdwg.mxu0
    %v560 = vmul.f32 %v295, %v374
    %v562 = vsel %vm380, %v560, 0
    %564 = vmatprep.subr.mxu0 0.0
    %565 = vmatpush1.msra.mxu0 %v386
    %566 = vmatprep.subr.mxu0 0.0
    %567 = vmatpush1.msra.mxu0 0.0
    %568 = vmatprep.subr.mxu0 0.0
    %569 = vmatpush1.msra.mxu0 0.0
    %570 = vmatprep.subr.mxu0 0.0
    %571 = vmatpush1.msra.mxu0 0.0
    %572 = vmatprep.subr.mxu0 0.0
    %573 = vmatpush1.msra.mxu0 0.0
    %574 = vmatprep.subr.mxu0 0.0
    %575 = vmatpush1.msra.mxu0 0.0
    %576 = vmatprep.subr.mxu0 0.0
    %577 = vmatpush1.msra.mxu0 0.0
    %578 = vmatprep.subr.mxu0 0.0
    %579 = vmatpush1.msra.mxu0 0.0
    %580 = vmatprep.subr.mxu0 0.0
    %581 = vmatpush1.msra.mxu0 0.0
    %582 = vmatprep.subr.mxu0 0.0
    %583 = vmatpush1.msra.mxu0 0.0
    %584 = vmatprep.subr.mxu0 0.0
    %585 = vmatpush1.msra.mxu0 0.0
    %586 = vmatprep.subr.mxu0 0.0
    %587 = vmatpush1.msra.mxu0 0.0
    %588 = vmatprep.subr.mxu0 0.0
    %589 = vmatpush1.msra.mxu0 0.0
    %590 = vmatprep.subr.mxu0 0.0
    %591 = vmatpush1.msra.mxu0 0.0
    %592 = vmatprep.subr.mxu0 0.0
    %593 = vmatpush1.msra.mxu0 0.0
    %594 = vmatprep.subr.mxu0 0.0
    %595 = vmatpush1.msra.mxu0 0.0
    %596 = vmatprep.subr.mxu0 0.0
    %597 = vmatpush1.msra.mxu0 0.0
    %598 = vmatprep.subr.mxu0 0.0
    %599 = vmatpush1.msra.mxu0 0.0
    %600 = vmatprep.subr.mxu0 0.0
    %601 = vmatpush1.msra.mxu0 0.0
    %602 = vmatprep.subr.mxu0 0.0
    %603 = vmatpush1.msra.mxu0 0.0
    %604 = vmatprep.subr.mxu0 0.0
    %605 = vmatpush1.msra.mxu0 0.0
    %606 = vmatprep.subr.mxu0 0.0
    %607 = vmatpush1.msra.mxu0 0.0
    %608 = vmatprep.subr.mxu0 0.0
    %609 = vmatpush1.msra.mxu0 0.0
    %610 = vmatprep.subr.mxu0 0.0
    %611 = vmatpush1.msra.mxu0 0.0
    %612 = vmatprep.subr.mxu0 0.0
    %613 = vmatpush1.msra.mxu0 0.0
    %614 = vmatprep.subr.mxu0 0.0
    %615 = vmatpush1.msra.mxu0 0.0
    %616 = vmatprep.subr.mxu0 0.0
    %617 = vmatpush1.msra.mxu0 0.0
    %618 = vmatprep.subr.mxu0 0.0
    %619 = vmatpush1.msra.mxu0 0.0
    %620 = vmatprep.subr.mxu0 0.0
    %621 = vmatpush1.msra.mxu0 0.0
    %622 = vmatprep.subr.mxu0 0.0
    %623 = vmatpush1.msra.mxu0 0.0
    %624 = vmatprep.subr.mxu0 0.0
    %625 = vmatpush1.msra.mxu0 0.0
    %626 = vmatprep.subr.mxu0 0.0
    %627 = vmatpush1.msra.mxu0 0.0
    %628 = vmatprep.mubr.f32.mxu0 0.0
    %629 = vmatmul.mubr.f32.gmra.mrb[0].mxu0 %v562
    %v630 = vpop.f32.mrb[0].mxu0
    %v631 = vadd.f32 0.0, %v630
    %v632 = vpop.f32.mrb[0].mxu0
    %633 = vdwg.mxu0
    %v635 = vsel %vm471, %v631, 0
    %637 = vmatprep.subr.mxu0 0.0
    %638 = vmatpush1.msra.mxu0 %v635
    %639 = vmatprep.subr.mxu0 0.0
    %640 = vmatpush1.msra.mxu0 0.0
    %641 = vmatprep.subr.mxu0 0.0
    %642 = vmatpush1.msra.mxu0 0.0
    %643 = vmatprep.subr.mxu0 0.0
    %644 = vmatpush1.msra.mxu0 0.0
    %645 = vmatprep.subr.mxu0 0.0
    %646 = vmatpush1.msra.mxu0 0.0
    %647 = vmatprep.subr.mxu0 0.0
    %648 = vmatpush1.msra.mxu0 0.0
    %649 = vmatprep.subr.mxu0 0.0
    %650 = vmatpush1.msra.mxu0 0.0
    %651 = vmatprep.subr.mxu0 0.0
    %652 = vmatpush1.msra.mxu0 0.0
    %653 = vmatprep.subr.mxu0 0.0
    %654 = vmatpush1.msra.mxu0 0.0
    %655 = vmatprep.subr.mxu0 0.0
    %656 = vmatpush1.msra.mxu0 0.0
    %657 = vmatprep.subr.mxu0 0.0
    %658 = vmatpush1.msra.mxu0 0.0
    %659 = vmatprep.subr.mxu0 0.0
    %660 = vmatpush1.msra.mxu0 0.0
    %661 = vmatprep.subr.mxu0 0.0
    %662 = vmatpush1.msra.mxu0 0.0
    %663 = vmatprep.subr.mxu0 0.0
    %664 = vmatpush1.msra.mxu0 0.0
    %665 = vmatprep.subr.mxu0 0.0
    %666 = vmatpush1.msra.mxu0 0.0
    %667 = vmatprep.subr.mxu0 0.0
    %668 = vmatpush1.msra.mxu0 0.0
    %669 = vmatprep.subr.mxu0 0.0
    %670 = vmatpush1.msra.mxu0 0.0
    %671 = vmatprep.subr.mxu0 0.0
    %672 = vmatpush1.msra.mxu0 0.0
    %673 = vmatprep.subr.mxu0 0.0
    %674 = vmatpush1.msra.mxu0 0.0
    %675 = vmatprep.subr.mxu0 0.0
    %676 = vmatpush1.msra.mxu0 0.0
    %677 = vmatprep.subr.mxu0 0.0
    %678 = vmatpush1.msra.mxu0 0.0
    %679 = vmatprep.subr.mxu0 0.0
    %680 = vmatpush1.msra.mxu0 0.0
    %681 = vmatprep.subr.mxu0 0.0
    %682 = vmatpush1.msra.mxu0 0.0
    %683 = vmatprep.subr.mxu0 0.0
    %684 = vmatpush1.msra.mxu0 0.0
    %685 = vmatprep.subr.mxu0 0.0
    %686 = vmatpush1.msra.mxu0 0.0
    %687 = vmatprep.subr.mxu0 0.0
    %688 = vmatpush1.msra.mxu0 0.0
    %689 = vmatprep.subr.mxu0 0.0
    %690 = vmatpush1.msra.mxu0 0.0
    %691 = vmatprep.subr.mxu0 0.0
    %692 = vmatpush1.msra.mxu0 0.0
    %693 = vmatprep.subr.mxu0 0.0
    %694 = vmatpush1.msra.mxu0 0.0
    %695 = vmatprep.subr.mxu0 0.0
    %696 = vmatpush1.msra.mxu0 0.0
    %697 = vmatprep.subr.mxu0 0.0
    %698 = vmatpush1.msra.mxu0 0.0
    %699 = vmatprep.subr.mxu0 0.0
    %700 = vmatpush1.msra.mxu0 0.0
    %701 = vmatprep.mubr.f32.mxu0 0.0
    %702 = vmatmul.mubr.f32.gmra.mrb[0].mxu0 %v460
    %v703 = vpop.f32.mrb[0].mxu0
    %v704 = vadd.f32 0.0, %v703
    %v705 = vpop.f32.mrb[0].mxu0
    %706 = vmatprep.mubr.f32.mxu0 0.0
    %707 = vmatmul.mubr.f32.gmra.mrb[0].mxu0 %v463
    %v708 = vpop.f32.mrb[0].mxu0
    %v709 = vadd.f32 0.0, %v708
    %v710 = vpop.f32.mrb[0].mxu0
    %711 = vmatprep.mubr.f32.mxu0 0.0
    %712 = vmatmul.mubr.f32.gmra.mrb[0].mxu0 %v466
    %v713 = vpop.f32.mrb[0].mxu0
    %v714 = vadd.f32 0.0, %v713
    %v715 = vpop.f32.mrb[0].mxu0
    %716 = vmatprep.mubr.f32.mxu0 0.0
    %717 = vmatmul.mubr.f32.gmra.mrb[0].mxu0 %v469
    %v718 = vpop.f32.mrb[0].mxu0
    %v719 = vadd.f32 0.0, %v718
    %v720 = vpop.f32.mrb[0].mxu0
    %721 = vdwg.mxu0
    %v722 = vmul.f32 %v63, %v542
    %v723 = vmul.f32 %v64, %v547
    %v724 = vmul.f32 %v65, %v552
    %v725 = vmul.f32 %v66, %v557
    %v726 = vsub.f32 %v722, %v704
    %v727 = vsub.f32 %v723, %v709
    %v728 = vsub.f32 %v724, %v714
    %v729 = vsub.f32 %v725, %v719
    %v730 = vld [vmem:[%s5] sm:$0x1]
    %v732 = vlaneseq
    %v733 = vshrl.u32 %v732, 7
    %v734 = vsub.s32 0, %v733
    %v735 = vrot.slane %v730, %v734
    %v737 = vmul.f32 %v726, %v735
    %v738 = vmul.f32 %v727, %v735
    %v739 = vmul.f32 %v728, %v735
    %v740 = vmul.f32 %v729, %v735
    %v741 = vld [vmem:[%s6] sm:$0x1]
    %v743 = vlaneseq
    %v744 = vshrl.u32 %v743, 7
    %v745 = vsub.s32 0, %v744
    %v746 = vrot.slane %v741, %v745
    %v748 = vadd.f32 %v737, %v746
    %v749 = vadd.f32 %v738, %v746
    %v750 = vadd.f32 %v739, %v746
    %v751 = vadd.f32 %v740, %v746
    %v752 = vmin.f32 %v748, 20.0
    %v753 = vmin.f32 %v749, 20.0
    %v754 = vmin.f32 %v750, 20.0
    %v755 = vmin.f32 %v751, 20.0
    %v756 = vmul.f32 %v752, 1.442695
    %v757 = vpow.pop %v756
    %v758 = vmul.f32 %v753, 1.442695
    %v759 = vpow.pop %v758
    %v760 = vmul.f32 %v754, 1.442695
    %v761 = vpow.pop %v760
    %v762 = vmul.f32 %v755, 1.442695
    %v763 = vpow.pop %v762
    %v764 = vadd.f32 %v757, 2.0
    %v765 = vadd.f32 %v759, 2.0
    %v766 = vadd.f32 %v761, 2.0
    %v767 = vadd.f32 %v763, 2.0
    %v768 = vmul.f32 %v757, %v764
    %v769 = vmul.f32 %v759, %v765
    %v770 = vmul.f32 %v761, %v766
    %v771 = vmul.f32 %v763, %v767
    %v772 = vmul.f32 %v748, %v768
    %v773 = vmul.f32 %v749, %v769
    %v774 = vmul.f32 %v750, %v770
    %v775 = vmul.f32 %v751, %v771
    %v776 = vadd.f32 %v768, 2.0
    %v777 = vadd.f32 %v769, 2.0
    %v778 = vadd.f32 %v770, 2.0
    %v779 = vadd.f32 %v771, 2.0
    %v780 = vrcp.pop %v776
    %v781 = vmul.f32 %v772, %v780
    %v782 = vrcp.pop %v777
    %v783 = vmul.f32 %v773, %v782
    %v784 = vrcp.pop %v778
    %v785 = vmul.f32 %v774, %v784
    %v786 = vrcp.pop %v779
    %v787 = vmul.f32 %v775, %v786
    %v788 = vpack.c.bf16 %v783, %v781
    %v789 = vpack.c.bf16 %v787, %v785
    %v790 = vld [vmem:[%s7] sm:$0xf]
    %v791 = vld [vmem:[%s7 + $0x4] sm:$0xf]
    %v792 = vld [vmem:[%s7 + $0x8] sm:$0xf]
    %v793 = vld [vmem:[%s7 + $0xc] sm:$0xf]
    %v794 = vld [vmem:[%s7 + $0x10] sm:$0xf]
    %v795 = vld [vmem:[%s7 + $0x14] sm:$0xf]
    %v796 = vld [vmem:[%s7 + $0x18] sm:$0xf]
    %v797 = vld [vmem:[%s7 + $0x1c] sm:$0xf]
    %v806 = vunpack.c.l.b16 %v790
    %v807 = vunpack.c.l.b16 %v791
    %v808 = vunpack.c.l.b16 %v792
    %v809 = vunpack.c.l.b16 %v793
    %v810 = vunpack.c.l.b16 %v794
    %v811 = vunpack.c.l.b16 %v795
    %v812 = vunpack.c.l.b16 %v796
    %v813 = vunpack.c.l.b16 %v797
    %v814 = vpack.c.b16 %v807, %v806
    %v815 = vpack.c.b16 %v809, %v808
    %v816 = vpack.c.b16 %v811, %v810
    %v817 = vpack.c.b16 %v813, %v812
    %v823 = vsel %vm224, %v788, 0
    %v826 = vsel %vm224, %v789, 0
    %828 = vmatprep.subr.bf16.mxu0 0
    %829 = vmatpush1.bf16.msra.mxu0 %v814
    %830 = vmatprep.subr.bf16.mxu0 0
    %831 = vmatpush1.bf16.msra.mxu0 %v815
    %832 = vmatprep.subr.bf16.mxu0 0
    %833 = vmatpush1.bf16.msra.mxu0 %v816
    %834 = vmatprep.subr.bf16.mxu0 0
    %835 = vmatpush1.bf16.msra.mxu0 %v817
    %836 = vmatprep.subr.bf16.mxu0 0
    %837 = vmatpush1.bf16.msra.mxu0 0
    %838 = vmatprep.subr.bf16.mxu0 0
    %839 = vmatpush1.bf16.msra.mxu0 0
    %840 = vmatprep.subr.bf16.mxu0 0
    %841 = vmatpush1.bf16.msra.mxu0 0
    %842 = vmatprep.subr.bf16.mxu0 0
    %843 = vmatpush1.bf16.msra.mxu0 0
    %844 = vmatprep.subr.bf16.mxu0 0
    %845 = vmatpush1.bf16.msra.mxu0 0
    %846 = vmatprep.subr.bf16.mxu0 0
    %847 = vmatpush1.bf16.msra.mxu0 0
    %848 = vmatprep.subr.bf16.mxu0 0
    %849 = vmatpush1.bf16.msra.mxu0 0
    %850 = vmatprep.subr.bf16.mxu0 0
    %851 = vmatpush1.bf16.msra.mxu0 0
    %852 = vmatprep.subr.bf16.mxu0 0
    %853 = vmatpush1.bf16.msra.mxu0 0
    %854 = vmatprep.subr.bf16.mxu0 0
    %855 = vmatpush1.bf16.msra.mxu0 0
    %856 = vmatprep.subr.bf16.mxu0 0
    %857 = vmatpush1.bf16.msra.mxu0 0
    %858 = vmatprep.subr.bf16.mxu0 0
    %859 = vmatpush1.bf16.msra.mxu0 0
    %860 = vmatprep.mubr.bf16.mxu0 0
    %861 = vmatmul.mubr.bf16.gmra.mrb[0].mxu0 %v823
    %v862 = vpop.f32.mrb[0].mxu0
    %v863 = vadd.f32 0.0, %v862
    %v864 = vpop.f32.mrb[0].mxu0
    %v865 = vpop.f32.mrb[0].mxu0
    %v866 = vadd.f32 0.0, %v865
    %v867 = vpop.f32.mrb[0].mxu0
    %868 = vmatprep.mubr.bf16.mxu0 0
    %869 = vmatmul.mubr.bf16.gmra.mrb[0].mxu0 %v826
    %v870 = vpop.f32.mrb[0].mxu0
    %v871 = vadd.f32 0.0, %v870
    %v872 = vpop.f32.mrb[0].mxu0
    %v873 = vpop.f32.mrb[0].mxu0
    %v874 = vadd.f32 0.0, %v873
    %v875 = vpop.f32.mrb[0].mxu0
    %876 = vdwg.mxu0
    %v877 = vpack.c.bf16 %v866, %v863
    %v878 = vpack.c.bf16 %v874, %v871
    %v879 = vld [vmem:[#allocation5] sm:$0xff]
    %v880 = vld [vmem:[#allocation5 + $0x8] sm:$0xff]
    %v881 = vld [vmem:[#allocation5 + $0x10] sm:$0xff]
    %v882 = vld [vmem:[#allocation5 + $0x18] sm:$0xff]
    %v883 = vld [vmem:[#allocation5 + $0x20] sm:$0xff]
    %v884 = vld [vmem:[#allocation5 + $0x28] sm:$0xff]
    %v885 = vld [vmem:[#allocation5 + $0x30] sm:$0xff]
    %v886 = vld [vmem:[#allocation5 + $0x38] sm:$0xff]
    %v887 = vld [vmem:[#allocation5 + $0x40] sm:$0xff]
    %v888 = vld [vmem:[#allocation5 + $0x48] sm:$0xff]
    %v889 = vld [vmem:[#allocation5 + $0x50] sm:$0xff]
    %v890 = vld [vmem:[#allocation5 + $0x58] sm:$0xff]
    %v891 = vld [vmem:[#allocation5 + $0x60] sm:$0xff]
    %v892 = vld [vmem:[#allocation5 + $0x68] sm:$0xff]
    %v893 = vld [vmem:[#allocation5 + $0x70] sm:$0xff]
    %v894 = vld [vmem:[#allocation5 + $0x78] sm:$0xff]
    %v895 = vld [vmem:[#allocation5 + $0x80] sm:$0xff]
    %v896 = vld [vmem:[#allocation5 + $0x88] sm:$0xff]
    %v897 = vld [vmem:[#allocation5 + $0x90] sm:$0xff]
    %v898 = vld [vmem:[#allocation5 + $0x98] sm:$0xff]
    %v899 = vld [vmem:[#allocation5 + $0xa0] sm:$0xff]
    %v900 = vld [vmem:[#allocation5 + $0xa8] sm:$0xff]
    %v901 = vld [vmem:[#allocation5 + $0xb0] sm:$0xff]
    %v902 = vld [vmem:[#allocation5 + $0xb8] sm:$0xff]
    %v903 = vld [vmem:[#allocation5 + $0xc0] sm:$0xff]
    %v904 = vld [vmem:[#allocation5 + $0xc8] sm:$0xff]
    %v905 = vld [vmem:[#allocation5 + $0xd0] sm:$0xff]
    %v906 = vld [vmem:[#allocation5 + $0xd8] sm:$0xff]
    %v907 = vld [vmem:[#allocation5 + $0xe0] sm:$0xff]
    %v908 = vld [vmem:[#allocation5 + $0xe8] sm:$0xff]
    %v909 = vld [vmem:[#allocation5 + $0xf0] sm:$0xff]
    %v910 = vld [vmem:[#allocation5 + $0xf8] sm:$0xff]
    %v911 = vld [vmem:[#allocation5 + $0x100] sm:$0xff]
    %v912 = vld [vmem:[#allocation5 + $0x108] sm:$0xff]
    %v913 = vld [vmem:[#allocation5 + $0x110] sm:$0xff]
    %v914 = vld [vmem:[#allocation5 + $0x118] sm:$0xff]
    %v915 = vld [vmem:[#allocation5 + $0x120] sm:$0xff]
    %v916 = vld [vmem:[#allocation5 + $0x128] sm:$0xff]
    %v917 = vld [vmem:[#allocation5 + $0x130] sm:$0xff]
    %v918 = vld [vmem:[#allocation5 + $0x138] sm:$0xff]
    %v919 = vld [vmem:[#allocation5 + $0x140] sm:$0xff]
    %v920 = vld [vmem:[#allocation5 + $0x148] sm:$0xff]
    %v921 = vld [vmem:[#allocation5 + $0x150] sm:$0xff]
    %v922 = vld [vmem:[#allocation5 + $0x158] sm:$0xff]
    %v923 = vld [vmem:[#allocation5 + $0x160] sm:$0xff]
    %v924 = vld [vmem:[#allocation5 + $0x168] sm:$0xff]
    %v925 = vld [vmem:[#allocation5 + $0x170] sm:$0xff]
    %v926 = vld [vmem:[#allocation5 + $0x178] sm:$0xff]
    %v975 = vunpack.c.l.b16 %v879
    %v976 = vunpack.c.h.b16 %v879
    %v977 = vunpack.c.l.b16 %v880
    %v978 = vunpack.c.h.b16 %v880
    %v979 = vunpack.c.l.b16 %v881
    %v980 = vunpack.c.h.b16 %v881
    %v981 = vunpack.c.l.b16 %v882
    %v982 = vunpack.c.h.b16 %v882
    %v983 = vunpack.c.l.b16 %v883
    %v984 = vunpack.c.h.b16 %v883
    %v985 = vunpack.c.l.b16 %v884
    %v986 = vunpack.c.h.b16 %v884
    %v987 = vunpack.c.l.b16 %v885
    %v988 = vunpack.c.h.b16 %v885
    %v989 = vunpack.c.l.b16 %v886
    %v990 = vunpack.c.h.b16 %v886
    %v991 = vunpack.c.l.b16 %v887
    %v992 = vunpack.c.h.b16 %v887
    %v993 = vunpack.c.l.b16 %v888
    %v994 = vunpack.c.h.b16 %v888
    %v995 = vunpack.c.l.b16 %v889
    %v996 = vunpack.c.h.b16 %v889
    %v997 = vunpack.c.l.b16 %v890
    %v998 = vunpack.c.h.b16 %v890
    %v999 = vunpack.c.l.b16 %v891
    %v1000 = vunpack.c.h.b16 %v891
    %v1001 = vunpack.c.l.b16 %v892
    %v1002 = vunpack.c.h.b16 %v892
    %v1003 = vunpack.c.l.b16 %v893
    %v1004 = vunpack.c.h.b16 %v893
    %v1005 = vunpack.c.l.b16 %v894
    %v1006 = vunpack.c.h.b16 %v894
    %v1007 = vunpack.c.l.b16 %v895
    %v1008 = vunpack.c.h.b16 %v895
    %v1009 = vunpack.c.l.b16 %v896
    %v1010 = vunpack.c.h.b16 %v896
    %v1011 = vunpack.c.l.b16 %v897
    %v1012 = vunpack.c.h.b16 %v897
    %v1013 = vunpack.c.l.b16 %v898
    %v1014 = vunpack.c.h.b16 %v898
    %v1015 = vunpack.c.l.b16 %v899
    %v1016 = vunpack.c.h.b16 %v899
    %v1017 = vunpack.c.l.b16 %v900
    %v1018 = vunpack.c.h.b16 %v900
    %v1019 = vunpack.c.l.b16 %v901
    %v1020 = vunpack.c.h.b16 %v901
    %v1021 = vunpack.c.l.b16 %v902
    %v1022 = vunpack.c.h.b16 %v902
    %v1023 = vunpack.c.l.b16 %v903
    %v1024 = vunpack.c.h.b16 %v903
    %v1025 = vunpack.c.l.b16 %v904
    %v1026 = vunpack.c.h.b16 %v904
    %v1027 = vunpack.c.l.b16 %v905
    %v1028 = vunpack.c.h.b16 %v905
    %v1029 = vunpack.c.l.b16 %v906
    %v1030 = vunpack.c.h.b16 %v906
    %v1031 = vunpack.c.l.b16 %v907
    %v1032 = vunpack.c.h.b16 %v907
    %v1033 = vunpack.c.l.b16 %v908
    %v1034 = vunpack.c.h.b16 %v908
    %v1035 = vunpack.c.l.b16 %v909
    %v1036 = vunpack.c.h.b16 %v909
    %v1037 = vunpack.c.l.b16 %v910
    %v1038 = vunpack.c.h.b16 %v910
    %v1039 = vunpack.c.l.b16 %v911
    %v1040 = vunpack.c.h.b16 %v911
    %v1041 = vunpack.c.l.b16 %v912
    %v1042 = vunpack.c.h.b16 %v912
    %v1043 = vunpack.c.l.b16 %v913
    %v1044 = vunpack.c.h.b16 %v913
    %v1045 = vunpack.c.l.b16 %v914
    %v1046 = vunpack.c.h.b16 %v914
    %v1047 = vunpack.c.l.b16 %v915
    %v1048 = vunpack.c.h.b16 %v915
    %v1049 = vunpack.c.l.b16 %v916
    %v1050 = vunpack.c.h.b16 %v916
    %v1051 = vunpack.c.l.b16 %v917
    %v1052 = vunpack.c.h.b16 %v917
    %v1053 = vunpack.c.l.b16 %v918
    %v1054 = vunpack.c.h.b16 %v918
    %v1055 = vunpack.c.l.b16 %v919
    %v1056 = vunpack.c.h.b16 %v919
    %v1057 = vunpack.c.l.b16 %v920
    %v1058 = vunpack.c.h.b16 %v920
    %v1059 = vunpack.c.l.b16 %v921
    %v1060 = vunpack.c.h.b16 %v921
    %v1061 = vunpack.c.l.b16 %v922
    %v1062 = vunpack.c.h.b16 %v922
    %v1063 = vunpack.c.l.b16 %v923
    %v1064 = vunpack.c.h.b16 %v923
    %v1065 = vunpack.c.l.b16 %v924
    %v1066 = vunpack.c.h.b16 %v924
    %v1067 = vunpack.c.l.b16 %v925
    %v1068 = vunpack.c.h.b16 %v925
    %v1069 = vunpack.c.l.b16 %v926
    %v1070 = vunpack.c.h.b16 %v926
    %v1071 = vpack.c.b16 %v981, %v975
    %v1072 = vpack.c.b16 %v982, %v976
    %v1073 = vpack.c.b16 %v983, %v977
    %v1074 = vpack.c.b16 %v984, %v978
    %v1075 = vpack.c.b16 %v985, %v979
    %v1076 = vpack.c.b16 %v986, %v980
    %v1077 = vpack.c.b16 %v993, %v987
    %v1078 = vpack.c.b16 %v994, %v988
    %v1079 = vpack.c.b16 %v995, %v989
    %v1080 = vpack.c.b16 %v996, %v990
    %v1081 = vpack.c.b16 %v997, %v991
    %v1082 = vpack.c.b16 %v998, %v992
    %v1083 = vpack.c.b16 %v1005, %v999
    %v1084 = vpack.c.b16 %v1006, %v1000
    %v1085 = vpack.c.b16 %v1007, %v1001
    %v1086 = vpack.c.b16 %v1008, %v1002
    %v1087 = vpack.c.b16 %v1009, %v1003
    %v1088 = vpack.c.b16 %v1010, %v1004
    %v1089 = vpack.c.b16 %v1017, %v1011
    %v1090 = vpack.c.b16 %v1018, %v1012
    %v1091 = vpack.c.b16 %v1019, %v1013
    %v1092 = vpack.c.b16 %v1020, %v1014
    %v1093 = vpack.c.b16 %v1021, %v1015
    %v1094 = vpack.c.b16 %v1022, %v1016
    %v1095 = vpack.c.b16 %v1029, %v1023
    %v1096 = vpack.c.b16 %v1030, %v1024
    %v1097 = vpack.c.b16 %v1031, %v1025
    %v1098 = vpack.c.b16 %v1032, %v1026
    %v1099 = vpack.c.b16 %v1033, %v1027
    %v1100 = vpack.c.b16 %v1034, %v1028
    %v1101 = vpack.c.b16 %v1041, %v1035
    %v1102 = vpack.c.b16 %v1042, %v1036
    %v1103 = vpack.c.b16 %v1043, %v1037
    %v1104 = vpack.c.b16 %v1044, %v1038
    %v1105 = vpack.c.b16 %v1045, %v1039
    %v1106 = vpack.c.b16 %v1046, %v1040
    %v1107 = vpack.c.b16 %v1053, %v1047
    %v1108 = vpack.c.b16 %v1054, %v1048
    %v1109 = vpack.c.b16 %v1055, %v1049
    %v1110 = vpack.c.b16 %v1056, %v1050
    %v1111 = vpack.c.b16 %v1057, %v1051
    %v1112 = vpack.c.b16 %v1058, %v1052
    %v1113 = vpack.c.b16 %v1065, %v1059
    %v1114 = vpack.c.b16 %v1066, %v1060
    %v1115 = vpack.c.b16 %v1067, %v1061
    %v1116 = vpack.c.b16 %v1068, %v1062
    %v1117 = vpack.c.b16 %v1069, %v1063
    %v1118 = vpack.c.b16 %v1070, %v1064
    %1167 = vmatprep.subr.bf16.mxu0 %v1072
    %1168 = vmatpush1.bf16.msra.mxu0 %v1071
    %1169 = vmatprep.subr.bf16.mxu0 %v1078
    %1170 = vmatpush1.bf16.msra.mxu0 %v1077
    %1171 = vmatprep.subr.bf16.mxu0 %v1084
    %1172 = vmatpush1.bf16.msra.mxu0 %v1083
    %1173 = vmatprep.subr.bf16.mxu0 %v1090
    %1174 = vmatpush1.bf16.msra.mxu0 %v1089
    %1175 = vmatprep.subr.bf16.mxu0 %v1096
    %1176 = vmatpush1.bf16.msra.mxu0 %v1095
    %1177 = vmatprep.subr.bf16.mxu0 %v1102
    %1178 = vmatpush1.bf16.msra.mxu0 %v1101
    %1179 = vmatprep.subr.bf16.mxu0 %v1108
    %1180 = vmatpush1.bf16.msra.mxu0 %v1107
    %1181 = vmatprep.subr.bf16.mxu0 %v1114
    %1182 = vmatpush1.bf16.msra.mxu0 %v1113
    %1183 = vmatprep.subr.bf16.mxu0 0
    %1184 = vmatpush1.bf16.msra.mxu0 0
    %1185 = vmatprep.subr.bf16.mxu0 0
    %1186 = vmatpush1.bf16.msra.mxu0 0
    %1187 = vmatprep.subr.bf16.mxu0 0
    %1188 = vmatpush1.bf16.msra.mxu0 0
    %1189 = vmatprep.subr.bf16.mxu0 0
    %1190 = vmatpush1.bf16.msra.mxu0 0
    %1191 = vmatprep.subr.bf16.mxu0 0
    %1192 = vmatpush1.bf16.msra.mxu0 0
    %1193 = vmatprep.subr.bf16.mxu0 0
    %1194 = vmatpush1.bf16.msra.mxu0 0
    %1195 = vmatprep.subr.bf16.mxu0 0
    %1196 = vmatpush1.bf16.msra.mxu0 0
    %1197 = vmatprep.subr.bf16.mxu0 0
    %1198 = vmatpush1.bf16.msra.mxu0 0
    %1199 = vmatprep.mubr.bf16.mxu0 0
    %1200 = vmatmul.mubr.bf16.gmra.mrb[0].mxu0 %v877
    %v1201 = vpop.f32.mrb[0].mxu0
    %v1202 = vadd.f32 0.0, %v1201
    %v1203 = vpop.f32.mrb[0].mxu0
    %v1204 = vadd.f32 0.0, %v1203
    %v1205 = vpop.f32.mrb[0].mxu0
    %v1206 = vadd.f32 0.0, %v1205
    %v1207 = vpop.f32.mrb[0].mxu0
    %v1208 = vadd.f32 0.0, %v1207
    %1209 = vmatprep.mubr.bf16.mxu0 0
    %1210 = vmatmul.mubr.bf16.gmra.mrb[0].mxu0 %v878
    %v1211 = vpop.f32.mrb[0].mxu0
    %v1212 = vadd.f32 0.0, %v1211
    %v1213 = vpop.f32.mrb[0].mxu0
    %v1214 = vadd.f32 0.0, %v1213
    %v1215 = vpop.f32.mrb[0].mxu0
    %v1216 = vadd.f32 0.0, %v1215
    %v1217 = vpop.f32.mrb[0].mxu0
    %v1218 = vadd.f32 0.0, %v1217
    %1219 = vdwg.mxu0
    %1220 = vmatprep.subr.bf16.mxu0 %v1074
    %1221 = vmatpush1.bf16.msra.mxu0 %v1073
    %1222 = vmatprep.subr.bf16.mxu0 %v1080
    %1223 = vmatpush1.bf16.msra.mxu0 %v1079
    %1224 = vmatprep.subr.bf16.mxu0 %v1086
    %1225 = vmatpush1.bf16.msra.mxu0 %v1085
    %1226 = vmatprep.subr.bf16.mxu0 %v1092
    %1227 = vmatpush1.bf16.msra.mxu0 %v1091
    %1228 = vmatprep.subr.bf16.mxu0 %v1098
    %1229 = vmatpush1.bf16.msra.mxu0 %v1097
    %1230 = vmatprep.subr.bf16.mxu0 %v1104
    %1231 = vmatpush1.bf16.msra.mxu0 %v1103
    %1232 = vmatprep.subr.bf16.mxu0 %v1110
    %1233 = vmatpush1.bf16.msra.mxu0 %v1109
    %1234 = vmatprep.subr.bf16.mxu0 %v1116
    %1235 = vmatpush1.bf16.msra.mxu0 %v1115
    %1236 = vmatprep.subr.bf16.mxu0 0
    %1237 = vmatpush1.bf16.msra.mxu0 0
    %1238 = vmatprep.subr.bf16.mxu0 0
    %1239 = vmatpush1.bf16.msra.mxu0 0
    %1240 = vmatprep.subr.bf16.mxu0 0
    %1241 = vmatpush1.bf16.msra.mxu0 0
    %1242 = vmatprep.subr.bf16.mxu0 0
    %1243 = vmatpush1.bf16.msra.mxu0 0
    %1244 = vmatprep.subr.bf16.mxu0 0
    %1245 = vmatpush1.bf16.msra.mxu0 0
    %1246 = vmatprep.subr.bf16.mxu0 0
    %1247 = vmatpush1.bf16.msra.mxu0 0
    %1248 = vmatprep.subr.bf16.mxu0 0
    %1249 = vmatpush1.bf16.msra.mxu0 0
    %1250 = vmatprep.subr.bf16.mxu0 0
    %1251 = vmatpush1.bf16.msra.mxu0 0
    %1252 = vmatprep.mubr.bf16.mxu0 0
    %1253 = vmatmul.mubr.bf16.gmra.mrb[0].mxu0 %v877
    %v1254 = vpop.f32.mrb[0].mxu0
    %v1255 = vadd.f32 0.0, %v1254
    %v1256 = vpop.f32.mrb[0].mxu0
    %v1257 = vadd.f32 0.0, %v1256
    %v1258 = vpop.f32.mrb[0].mxu0
    %v1259 = vadd.f32 0.0, %v1258
    %v1260 = vpop.f32.mrb[0].mxu0
    %v1261 = vadd.f32 0.0, %v1260
    %1262 = vmatprep.mubr.bf16.mxu0 0
    %1263 = vmatmul.mubr.bf16.gmra.mrb[0].mxu0 %v878
    %v1264 = vpop.f32.mrb[0].mxu0
    %v1265 = vadd.f32 0.0, %v1264
    %v1266 = vpop.f32.mrb[0].mxu0
    %v1267 = vadd.f32 0.0, %v1266
    %v1268 = vpop.f32.mrb[0].mxu0
    %v1269 = vadd.f32 0.0, %v1268
    %v1270 = vpop.f32.mrb[0].mxu0
    %v1271 = vadd.f32 0.0, %v1270
    %1272 = vdwg.mxu0
    %1273 = vmatprep.subr.bf16.mxu0 %v1076
    %1274 = vmatpush1.bf16.msra.mxu0 %v1075
    %1275 = vmatprep.subr.bf16.mxu0 %v1082
    %1276 = vmatpush1.bf16.msra.mxu0 %v1081
    %1277 = vmatprep.subr.bf16.mxu0 %v1088
    %1278 = vmatpush1.bf16.msra.mxu0 %v1087
    %1279 = vmatprep.subr.bf16.mxu0 %v1094
    %1280 = vmatpush1.bf16.msra.mxu0 %v1093
    %1281 = vmatprep.subr.bf16.mxu0 %v1100
    %1282 = vmatpush1.bf16.msra.mxu0 %v1099
    %1283 = vmatprep.subr.bf16.mxu0 %v1106
    %1284 = vmatpush1.bf16.msra.mxu0 %v1105
    %1285 = vmatprep.subr.bf16.mxu0 %v1112
    %1286 = vmatpush1.bf16.msra.mxu0 %v1111
    %1287 = vmatprep.subr.bf16.mxu0 %v1118
    %1288 = vmatpush1.bf16.msra.mxu0 %v1117
    %1289 = vmatprep.subr.bf16.mxu0 0
    %1290 = vmatpush1.bf16.msra.mxu0 0
    %1291 = vmatprep.subr.bf16.mxu0 0
    %1292 = vmatpush1.bf16.msra.mxu0 0
    %1293 = vmatprep.subr.bf16.mxu0 0
    %1294 = vmatpush1.bf16.msra.mxu0 0
    %1295 = vmatprep.subr.bf16.mxu0 0
    %1296 = vmatpush1.bf16.msra.mxu0 0
    %1297 = vmatprep.subr.bf16.mxu0 0
    %1298 = vmatpush1.bf16.msra.mxu0 0
    %1299 = vmatprep.subr.bf16.mxu0 0
    %1300 = vmatpush1.bf16.msra.mxu0 0
    %1301 = vmatprep.subr.bf16.mxu0 0
    %1302 = vmatpush1.bf16.msra.mxu0 0
    %1303 = vmatprep.subr.bf16.mxu0 0
    %1304 = vmatpush1.bf16.msra.mxu0 0
    %1305 = vmatprep.mubr.bf16.mxu0 0
    %1306 = vmatmul.mubr.bf16.gmra.mrb[0].mxu0 %v877
    %v1307 = vpop.f32.mrb[0].mxu0
    %v1308 = vadd.f32 0.0, %v1307
    %v1309 = vpop.f32.mrb[0].mxu0
    %v1310 = vadd.f32 0.0, %v1309
    %v1311 = vpop.f32.mrb[0].mxu0
    %v1312 = vadd.f32 0.0, %v1311
    %v1313 = vpop.f32.mrb[0].mxu0
    %v1314 = vadd.f32 0.0, %v1313
    %1315 = vmatprep.mubr.bf16.mxu0 0
    %1316 = vmatmul.mubr.bf16.gmra.mrb[0].mxu0 %v878
    %v1317 = vpop.f32.mrb[0].mxu0
    %v1318 = vadd.f32 0.0, %v1317
    %v1319 = vpop.f32.mrb[0].mxu0
    %v1320 = vadd.f32 0.0, %v1319
    %v1321 = vpop.f32.mrb[0].mxu0
    %v1322 = vadd.f32 0.0, %v1321
    %v1323 = vpop.f32.mrb[0].mxu0
    %v1324 = vadd.f32 0.0, %v1323
    %1325 = vdwg.mxu0
    %v1326 = vpack.c.bf16 %v1206, %v1202
    %v1327 = vpack.c.bf16 %v1208, %v1204
    %v1328 = vpack.c.bf16 %v1216, %v1212
    %v1329 = vpack.c.bf16 %v1218, %v1214
    %v1330 = vpack.c.bf16 %v1259, %v1255
    %v1331 = vpack.c.bf16 %v1261, %v1257
    %v1332 = vpack.c.bf16 %v1269, %v1265
    %v1333 = vpack.c.bf16 %v1271, %v1267
    %v1334 = vpack.c.bf16 %v1312, %v1308
    %v1335 = vpack.c.bf16 %v1314, %v1310
    %v1336 = vpack.c.bf16 %v1322, %v1318
    %v1337 = vpack.c.bf16 %v1324, %v1320
    %v1338 = vld [vmem:[%s9] sm:$0xf]
    %v1339 = vld [vmem:[%s9 + $0x4] sm:$0xf]
    %v1340 = vld [vmem:[%s9 + $0x8] sm:$0xf]
    %v1341 = vld [vmem:[%s9 + $0xc] sm:$0xf]
    %v1342 = vld [vmem:[%s9 + $0x10] sm:$0xf]
    %v1343 = vld [vmem:[%s9 + $0x14] sm:$0xf]
    %v1344 = vld [vmem:[%s9 + $0x18] sm:$0xf]
    %v1345 = vld [vmem:[%s9 + $0x1c] sm:$0xf]
    %v1354 = vunpack.c.l.b16 %v1338
    %v1355 = vunpack.c.l.b16 %v1339
    %v1356 = vunpack.c.l.b16 %v1340
    %v1357 = vunpack.c.l.b16 %v1341
    %v1358 = vunpack.c.l.b16 %v1342
    %v1359 = vunpack.c.l.b16 %v1343
    %v1360 = vunpack.c.l.b16 %v1344
    %v1361 = vunpack.c.l.b16 %v1345
    %v1362 = vpack.c.b16 %v1355, %v1354
    %v1363 = vpack.c.b16 %v1357, %v1356
    %v1364 = vpack.c.b16 %v1359, %v1358
    %v1365 = vpack.c.b16 %v1361, %v1360
    %vm1366 = vcmask 785408
    %v1368 = vsel %vm1366, %v1362, 0
    %v1371 = vsel %vm1366, %v1363, 0
    %v1374 = vsel %vm1366, %v1364, 0
    %v1377 = vsel %vm1366, %v1365, 0
    %1379 = vmatprep.subr.bf16.mxu0 %v1327
    %1380 = vmatpush1.bf16.msra.mxu0 %v1326
    %1381 = vmatprep.subr.bf16.mxu0 %v1329
    %1382 = vmatpush1.bf16.msra.mxu0 %v1328
    %1383 = vmatprep.subr.bf16.mxu0 %v1331
    %1384 = vmatpush1.bf16.msra.mxu0 %v1330
    %1385 = vmatprep.subr.bf16.mxu0 %v1333
    %1386 = vmatpush1.bf16.msra.mxu0 %v1332
    %1387 = vmatprep.subr.bf16.mxu0 %v1335
    %1388 = vmatpush1.bf16.msra.mxu0 %v1334
    %1389 = vmatprep.subr.bf16.mxu0 %v1337
    %1390 = vmatpush1.bf16.msra.mxu0 %v1336
    %1391 = vmatprep.subr.bf16.mxu0 0
    %1392 = vmatpush1.bf16.msra.mxu0 0
    %1393 = vmatprep.subr.bf16.mxu0 0
    %1394 = vmatpush1.bf16.msra.mxu0 0
    %1395 = vmatprep.subr.bf16.mxu0 0
    %1396 = vmatpush1.bf16.msra.mxu0 0
    %1397 = vmatprep.subr.bf16.mxu0 0
    %1398 = vmatpush1.bf16.msra.mxu0 0
    %1399 = vmatprep.subr.bf16.mxu0 0
    %1400 = vmatpush1.bf16.msra.mxu0 0
    %1401 = vmatprep.subr.bf16.mxu0 0
    %1402 = vmatpush1.bf16.msra.mxu0 0
    %1403 = vmatprep.subr.bf16.mxu0 0
    %1404 = vmatpush1.bf16.msra.mxu0 0
    %1405 = vmatprep.subr.bf16.mxu0 0
    %1406 = vmatpush1.bf16.msra.mxu0 0
    %1407 = vmatprep.subr.bf16.mxu0 0
    %1408 = vmatpush1.bf16.msra.mxu0 0
    %1409 = vmatprep.subr.bf16.mxu0 0
    %1410 = vmatpush1.bf16.msra.mxu0 0
    %1411 = vmatprep.mubr.bf16.mxu0 0
    %1412 = vmatmul.mubr.bf16.gmra.mrb[0].mxu0 %v1368
    %v1413 = vpop.f32.mrb[0].mxu0
    %v1414 = vadd.f32 0.0, %v1413
    %v1415 = vpop.f32.mrb[0].mxu0
    %v1416 = vadd.f32 0.0, %v1415
    %v1417 = vpop.f32.mrb[0].mxu0
    %v1418 = vadd.f32 0.0, %v1417
    %v1419 = vpop.f32.mrb[0].mxu0
    %v1420 = vadd.f32 0.0, %v1419
    %1421 = vmatprep.mubr.bf16.mxu0 0
    %1422 = vmatmul.mubr.bf16.gmra.mrb[0].mxu0 %v1371
    %v1423 = vpop.f32.mrb[0].mxu0
    %v1424 = vadd.f32 0.0, %v1423
    %v1425 = vpop.f32.mrb[0].mxu0
    %v1426 = vadd.f32 0.0, %v1425
    %v1427 = vpop.f32.mrb[0].mxu0
    %v1428 = vadd.f32 0.0, %v1427
    %v1429 = vpop.f32.mrb[0].mxu0
    %v1430 = vadd.f32 0.0, %v1429
    %1431 = vmatprep.mubr.bf16.mxu0 0
    %1432 = vmatmul.mubr.bf16.gmra.mrb[0].mxu0 %v1374
    %v1433 = vpop.f32.mrb[0].mxu0
    %v1434 = vadd.f32 0.0, %v1433
    %v1435 = vpop.f32.mrb[0].mxu0
    %v1436 = vadd.f32 0.0, %v1435
    %v1437 = vpop.f32.mrb[0].mxu0
    %v1438 = vadd.f32 0.0, %v1437
    %v1439 = vpop.f32.mrb[0].mxu0
    %v1440 = vadd.f32 0.0, %v1439
    %1441 = vmatprep.mubr.bf16.mxu0 0
    %1442 = vmatmul.mubr.bf16.gmra.mrb[0].mxu0 %v1377
    %v1443 = vpop.f32.mrb[0].mxu0
    %v1444 = vadd.f32 0.0, %v1443
    %v1445 = vpop.f32.mrb[0].mxu0
    %v1446 = vadd.f32 0.0, %v1445
    %v1447 = vpop.f32.mrb[0].mxu0
    %v1448 = vadd.f32 0.0, %v1447
    %v1449 = vpop.f32.mrb[0].mxu0
    %v1450 = vadd.f32 0.0, %v1449
    %1451 = vdwg.mxu0
    %1452 = vst [vmem:[#allocation7] sm:$0xff] %v1414
    %1453 = vst [vmem:[#allocation7 + $0x8] sm:$0xff] %v1416
    %1454 = vst [vmem:[#allocation7 + $0x10] sm:$0xff] %v1418
    %1455 = vst [vmem:[#allocation7 + $0x18] sm:$0xff] %v1420
    %1456 = vst [vmem:[#allocation7 + $0x20] sm:$0xff] %v1424
    %1457 = vst [vmem:[#allocation7 + $0x28] sm:$0xff] %v1426
    %1458 = vst [vmem:[#allocation7 + $0x30] sm:$0xff] %v1428
    %1459 = vst [vmem:[#allocation7 + $0x38] sm:$0xff] %v1430
    %1460 = vst [vmem:[#allocation7 + $0x40] sm:$0xff] %v1434
    %1461 = vst [vmem:[#allocation7 + $0x48] sm:$0xff] %v1436
    %1462 = vst [vmem:[#allocation7 + $0x50] sm:$0xff] %v1438
    %1463 = vst [vmem:[#allocation7 + $0x58] sm:$0xff] %v1440
    %1464 = vst [vmem:[#allocation7 + $0x60] sm:$0xff] %v1444
    %1465 = vst [vmem:[#allocation7 + $0x68] sm:$0xff] %v1446
    %1466 = vst [vmem:[#allocation7 + $0x70] sm:$0xff] %v1448
    %1467 = vst [vmem:[#allocation7 + $0x78] sm:$0xff] %v1450
    // Predicated region
    $region50: #{tpu_custom_call.1} parent=1 // pred_check
      _
    $region51: #{tpu_custom_call.1} parent=1 // pred_check_branch
      %1469 = sbr.rel (0) target = $region53
    $region52: #{tpu_custom_call.1} parent=1 // pred_region
      %s1471 = ssub.s32 2048, 2048
      %1472 = vsyncadd [#allocation4], %s1471
      %s1473 = sshll.u32 [#allocation7], 4
      %s1474 = int_to_ptr.vmem [resolvable:$true] %s1473
      %1479 = dma.vmem_to_hbm [thread:$0]  %s1474, 2048, %s10, [#allocation4], 256, 256, 16
    $region53: #{tpu_custom_call.1} parent=1 // pred_fallthru
      _
    // Predicated region
    $region54: #{tpu_custom_call.1} parent=1 // pred_check
      _
    $region55: #{tpu_custom_call.1} parent=1 // pred_check_branch
      %1481 = sbr.rel (0) target = $region57
    $region56: #{tpu_custom_call.1} parent=1 // pred_region
      %1482 = dma.done [#allocation4], 2048
    $region57: #{tpu_custom_call.1} parent=1 // pred_fallthru
      _
    %1483 = vsyncpa [#allocation3], 1
    %1484 = vsyncpa [#allocation6], 1
    %1485 = vsyncpa [#allocation4], 1

</llo_original>
